<compile_context>
chip_gen: v7x
topology: tpu7x:2x2x1
jax: 0.10.0
libtpu: 0.0.40
codegen_flags: <defaults>
</compile_context>

<pallas_src>
import functools

import jax
import jax.numpy as jnp
from jax.experimental import pallas as pl
from jax.experimental.pallas import tpu as pltpu

VMEM_SPEC = pl.BlockSpec(memory_space=pltpu.MemorySpace.VMEM)


# --------------------------------------------------------------------------
# Fused kernel: embedding -> (hoisted) LSTM input projection -> recurrence ->
#               packed actor/critic heads.  All intermediates stay as VMEM/vreg values.
# --------------------------------------------------------------------------
def _base_model_kernel(T, B, H,
                       img_ref, tgt_ref, act_ref,
                       wg_ref, bg_ref, wa_ref, ba_ref,
                       wf_img_ref, wf_g_ref, wf_a_ref, bf_ref,
                       wih_ref, whh_ref, blstm_ref,
                       w1_ref, b1_ref, w2_ref, b2_ref,
                       out_ref, hN_ref, cN_ref):
    f32 = jnp.float32

    # ---- embedding (all T*B rows at once) -------------------------------
    glove = jnp.maximum(
        jnp.dot(tgt_ref[...], wg_ref[...], preferred_element_type=f32) + bg_ref[...], 0.0)
    a_emb = jnp.maximum(
        jnp.dot(act_ref[...], wa_ref[...], preferred_element_type=f32) + ba_ref[...], 0.0)
    # concat-then-matmul rewritten as a sum of matmuls against row-split Wf (equivalent).
    fused = jnp.maximum(
        jnp.dot(img_ref[...], wf_img_ref[...], preferred_element_type=f32)
        + jnp.dot(glove, wf_g_ref[...], preferred_element_type=f32)
        + jnp.dot(a_emb, wf_a_ref[...], preferred_element_type=f32)
        + bf_ref[...], 0.0)                                        # (T*B, H)

    # ---- LSTM: input projection hoisted out of the recurrence ------------
    # Gate order along the 4H lane axis: [i, f, g, o] (PyTorch convention).
    # g-gate columns of W_ih / W_hh / bias are pre-scaled by 2 in pack_params so that
    # tanh(x) == 2*sigmoid(2x) - 1 needs no tanh on the gate slab.
    xproj = (jnp.dot(fused, wih_ref[...], preferred_element_type=f32)
             + blstm_ref[...])                                     # (T*B, 4H)
    whh = whh_ref[...]                                             # (H, 4H)

    h = jnp.zeros((B, H), f32)
    c = jnp.zeros((B, H), f32)
    hs = []
    # Static unroll over T (rows are time-major: row = t*B + b, B a multiple of 8 so
    # each step's slice is sublane-aligned).  Serial critical path per step is one
    # (B,H)@(H,4H) MXU push + one sigmoid slab + one tanh(c) on the EUP.
    for t in range(T):
        gates = xproj[t * B:(t + 1) * B, :] + jnp.dot(h, whh, preferred_element_type=f32)
        s = jax.nn.sigmoid(gates)                                  # single EUP slab
        i = s[:, 0 * H:1 * H]
        f = s[:, 1 * H:2 * H]
        g = 2.0 * s[:, 2 * H:3 * H] - 1.0                          # folded tanh (VPU affine)
        o = s[:, 3 * H:4 * H]
        c = f * c + i * g
        h = o * jnp.tanh(c)
        hs.append(h)                                               # kept as values, no stores
    hN_ref[...] = h
    cN_ref[...] = c

    # ---- actor / critic heads on all rows, packed & lane-dense ------------
    # w1 = [wa1 | wc1] (H, 2*128); w2 is block-diagonal (2*128, 128-wide slab):
    #   actor logits land in lanes [0, action_space), critic value in lane action_space.
    # Computed once on the concatenated states so W1/W2 are staged into the MXU once.
    S = jnp.concatenate(hs, axis=0)                                # (T*B, H) as a value
    h1 = jnp.maximum(
        jnp.dot(S, w1_ref[...], preferred_element_type=f32) + b1_ref[...], 0.0)
    out_ref[...] = jnp.maximum(
        jnp.dot(h1, w2_ref[...], preferred_element_type=f32) + b2_ref[...], 0.0)


def _fused_forward(params, img, tgt, act, *, T, B, H):
    slab = params["head_b2"].shape[-1]
    kernel = functools.partial(_base_model_kernel, T, B, H)
    return pl.pallas_call(
        kernel,
        out_shape=(
            jax.ShapeDtypeStruct((T * B, slab), jnp.float32),   # packed actor|critic slab
            jax.ShapeDtypeStruct((B, H), jnp.float32),          # h_N
            jax.ShapeDtypeStruct((B, H), jnp.float32),          # c_N
        ),
        in_specs=[VMEM_SPEC] * 18,
        out_specs=(VMEM_SPEC, VMEM_SPEC, VMEM_SPEC),
    )(img, tgt, act,
      params["wg"], params["bg"], params["wa"], params["ba"],
      params["wf_img"], params["wf_g"], params["wf_a"], params["bf"],
      params["lstm_wih_p"], params["lstm_whh_p"], params["lstm_b_p"],
      params["head_w1"], params["head_b1"], params["head_w2"], params["head_b2"])


# --------------------------------------------------------------------------
# Full forward pass (wrapper glue: only input/output layout plumbing).
# --------------------------------------------------------------------------
@functools.partial(jax.jit, static_argnames=("action_space",))
def base_model_forward(params, target, input_, action_probs, *, action_space):
    bs, T = target.shape[0], target.shape[1]
    H = params["bf"].shape[-1]
    B_pad = ((bs + 7) // 8) * 8          # sublane-align the per-step row block

    def prep(x):
        # (bs, T, F) -> time-major, zero-pad batch to B_pad -> (T*B_pad, F)
        x = x.transpose(1, 0, 2)
        x = jnp.pad(x, ((0, 0), (0, B_pad - bs), (0, 0)))
        return x.reshape(T * B_pad, -1)

    # dropout == identity (inference), squeeze(2).squeeze(2)
    img = prep(input_.reshape(bs, T, input_.shape[2]))
    tgt = prep(target)
    act = prep(action_probs)

    out_slab, hN, cN = _fused_forward(params, img, tgt, act, T=T, B=B_pad, H=H)

    out = out_slab.reshape(T, B_pad, -1)[:, :bs, :].transpose(1, 0, 2)   # (bs, T, slab)
    actor_out = out[:, :, :action_space]
    critic_out = out[:, :, action_space:action_space + 1]
    return actor_out, critic_out, (hN[None, :bs], cN[None, :bs])


# --------------------------------------------------------------------------
# Parameter init (PyTorch-like unpacked form) + packing into kernel layout.
# --------------------------------------------------------------------------
def init_params(key, *, glove_dim, glove_embed_dim, action_space, action_dim,
                resnet_dim, hidden):
    ks = iter(jax.random.split(key, 32))
    n = lambda shape: (jax.random.normal(next(ks), shape, jnp.float32) * 0.05)
    fused_in = resnet_dim + glove_embed_dim + action_dim
    wf = n((fused_in, hidden))
    return dict(
        wg=n((glove_dim, glove_embed_dim)), bg=n((1, glove_embed_dim)),
        wa=n((action_space, action_dim)),   ba=n((1, action_dim)),
        wf_img=wf[:resnet_dim],
        wf_g=wf[resnet_dim:resnet_dim + glove_embed_dim],
        wf_a=wf[resnet_dim + glove_embed_dim:],
        bf=n((1, hidden)),
        # LSTM, PyTorch gate order (i, f, g, o); b = b_ih + b_hh pre-folded.
        # NOTE: when loading a real checkpoint, fold the two biases before packing.
        lstm_wih=n((4, hidden, hidden)),
        lstm_whh=n((4, hidden, hidden)),
        lstm_b=n((4, 1, hidden)),
        wa1=n((hidden, 128)), ba1=n((1, 128)),
        wa2=n((128, action_space)), ba2=n((1, action_space)),
        wc1=n((hidden, 128)), bc1=n((1, 128)),
        wc2=n((128, 1)), bc2=n((1, 1)),
    )


def pack_params(p, *, action_space):
    """Pack gates on the lane axis (with the g-gate x2 tanh fold) and fuse the
    actor/critic heads lane-densely."""
    H = p["bf"].shape[-1]
    # tanh(x) = 2*sigmoid(2x) - 1  ->  pre-scale the g-gate (index 2) by 2.
    scale = jnp.array([1.0, 1.0, 2.0, 1.0], jnp.float32).reshape(4, 1, 1)
    # LSTM: (4, H, H) -> (H, 4H); (4, 1, H) -> (1, 4H)
    wih_p = (p["lstm_wih"] * scale).transpose(1, 0, 2).reshape(H, 4 * H)
    whh_p = (p["lstm_whh"] * scale).transpose(1, 0, 2).reshape(H, 4 * H)
    b_p = (p["lstm_b"] * scale).transpose(1, 0, 2).reshape(1, 4 * H)

    hh = p["wa1"].shape[1]                      # head hidden (=128)
    slab = max(128, ((action_space + 1 + 127) // 128) * 128)
    w1 = jnp.concatenate([p["wa1"], p["wc1"]], axis=1)           # (H, 2*hh)
    b1 = jnp.concatenate([p["ba1"], p["bc1"]], axis=1)           # (1, 2*hh)
    w2 = jnp.zeros((2 * hh, slab), jnp.float32)
    w2 = w2.at[:hh, :action_space].set(p["wa2"])
    w2 = w2.at[hh:, action_space].set(p["wc2"][:, 0])
    b2 = jnp.zeros((1, slab), jnp.float32)
    b2 = b2.at[0, :action_space].set(p["ba2"][0])
    b2 = b2.at[0, action_space].set(p["bc2"][0, 0])

    return dict(
        wg=p["wg"], bg=p["bg"], wa=p["wa"], ba=p["ba"],
        wf_img=p["wf_img"], wf_g=p["wf_g"], wf_a=p["wf_a"], bf=p["bf"],
        lstm_wih_p=wih_p, lstm_whh_p=whh_p, lstm_b_p=b_p,
        head_w1=w1, head_b1=b1, head_w2=w2, head_b2=b2,
    )


# --------------------------------------------------------------------------
# Pure-JAX reference (unpacked weights) for correctness checking.
# --------------------------------------------------------------------------
def reference_forward(params, target, input_, action_probs):
    bs, T = target.shape[0], target.shape[1]
    img = input_.reshape(bs * T, input_.shape[2])
    tgt = target.reshape(bs * T, -1)
    act = action_probs.reshape(bs * T, -1)
    glove = jax.nn.relu(tgt @ params["wg"] + params["bg"])
    a_emb = jax.nn.relu(act @ params["wa"] + params["ba"])
    cat = jnp.concatenate([img, glove, a_emb], axis=1)
    wf = jnp.concatenate([params["wf_img"], params["wf_g"], params["wf_a"]], axis=0)
    fused = jax.nn.relu(cat @ wf + params["bf"])
    H = fused.shape[-1]
    x = fused.reshape(bs, T, H)

    def step(carry, xt):
        h, c = carry
        gs = [xt @ params["lstm_wih"][k] + h @ params["lstm_whh"][k] + params["lstm_b"][k]
              for k in range(4)]
        i, f, g, o = (jax.nn.sigmoid(gs[0]), jax.nn.sigmoid(gs[1]),
                      jnp.tanh(gs[2]), jax.nn.sigmoid(gs[3]))
        c = f * c + i * g
        h = o * jnp.tanh(c)
        return (h, c), h

    h0 = jnp.zeros((bs, H), jnp.float32)
    (hN, cN), ys = jax.lax.scan(step, (h0, h0), x.transpose(1, 0, 2))
    s = ys.transpose(1, 0, 2).reshape(bs * T, H)
    actor = jax.nn.relu(jax.nn.relu(s @ params["wa1"] + params["ba1"]) @ params["wa2"] + params["ba2"])
    critic = jax.nn.relu(jax.nn.relu(s @ params["wc1"] + params["bc1"]) @ params["wc2"] + params["bc2"])
    return actor.reshape(bs, T, -1), critic.reshape(bs, T, -1), (hN[None], cN[None])


if __name__ == "__main__":
    # Small args: glove_dim=32, glove_embed_dim=32, action_space=8, action_dim=16,
    # hidden_state_dim=32, resnet_dim=512 (fixed), bs=2, len_seq=8.
    bs, T = 2, 8
    glove_dim, glove_embed_dim = 32, 32
    action_space, action_dim = 8, 16
    hidden, resnet_dim = 32, 512

    key = jax.random.PRNGKey(0)
    kp, k1, k2, k3 = jax.random.split(key, 4)
    raw = init_params(kp, glove_dim=glove_dim, glove_embed_dim=glove_embed_dim,
                      action_space=action_space, action_dim=action_dim,
                      resnet_dim=resnet_dim, hidden=hidden)
    params = pack_params(raw, action_space=action_space)

    target = jax.random.normal(k1, (bs, T, glove_dim), jnp.float32)
    input_ = jax.random.normal(k2, (bs, T, resnet_dim, 1, 1), jnp.float32)
    action_probs = jax.nn.softmax(
        jax.random.normal(k3, (bs, T, action_space), jnp.float32), axis=-1)

    actor, critic, (hs, cs) = base_model_forward(
        params, target, input_, action_probs, action_space=action_space)
    jax.block_until_ready((actor, critic, hs, cs))

    a_ref, c_ref, (hs_ref, cs_ref) = reference_forward(raw, target, input_, action_probs)
    assert actor.shape == (bs, T, action_space) and critic.shape == (bs, T, 1)
    assert hs.shape == (1, bs, hidden) and cs.shape == (1, bs, hidden)
    # 1e-4 tolerance: the tanh -> 2*sigmoid(2x)-1 gate fold changes rounding slightly.
    assert jnp.allclose(actor, a_ref, atol=1e-4, rtol=1e-4)
    assert jnp.allclose(critic, c_ref, atol=1e-4, rtol=1e-4)
    assert jnp.allclose(hs, hs_ref, atol=1e-4, rtol=1e-4)
    assert jnp.allclose(cs, cs_ref, atol=1e-4, rtol=1e-4)

    print("KERNEL_OK")
</pallas_src>

<mosaic_0001>
module attributes {stable_mosaic.version = 11 : i64} {
  func.func @_base_model_kernel(%arg0: memref<64x512xf32, #tpu.memory_space<vmem>>, %arg1: memref<64x32xf32, #tpu.memory_space<vmem>>, %arg2: memref<64x8xf32, #tpu.memory_space<vmem>>, %arg3: memref<32x32xf32, #tpu.memory_space<vmem>>, %arg4: memref<1x32xf32, #tpu.memory_space<vmem>>, %arg5: memref<8x16xf32, #tpu.memory_space<vmem>>, %arg6: memref<1x16xf32, #tpu.memory_space<vmem>>, %arg7: memref<512x32xf32, #tpu.memory_space<vmem>>, %arg8: memref<32x32xf32, #tpu.memory_space<vmem>>, %arg9: memref<16x32xf32, #tpu.memory_space<vmem>>, %arg10: memref<1x32xf32, #tpu.memory_space<vmem>>, %arg11: memref<32x128xf32, #tpu.memory_space<vmem>>, %arg12: memref<32x128xf32, #tpu.memory_space<vmem>>, %arg13: memref<1x128xf32, #tpu.memory_space<vmem>>, %arg14: memref<32x256xf32, #tpu.memory_space<vmem>>, %arg15: memref<1x256xf32, #tpu.memory_space<vmem>>, %arg16: memref<256x128xf32, #tpu.memory_space<vmem>>, %arg17: memref<1x128xf32, #tpu.memory_space<vmem>>, %arg18: memref<64x128xf32, #tpu.memory_space<vmem>>, %arg19: memref<8x32xf32, #tpu.memory_space<vmem>>, %arg20: memref<8x32xf32, #tpu.memory_space<vmem>>) attributes {dimension_semantics = [], scalar_prefetch = 0 : i64, scratch_operands = 0 : i64, tpu.core_type = #tpu.core_type<tc>} {
    %c0 = arith.constant 0 : index
    %c0_0 = arith.constant 0 : index
    %0 = vector.load %arg1[%c0, %c0_0] : memref<64x32xf32, #tpu.memory_space<vmem>>, vector<64x32xf32>
    %c0_1 = arith.constant 0 : index
    %c0_2 = arith.constant 0 : index
    %1 = vector.load %arg3[%c0_1, %c0_2] : memref<32x32xf32, #tpu.memory_space<vmem>>, vector<32x32xf32>
    %cst = arith.constant dense<0.000000e+00> : vector<64x32xf32>
    %2 = tpu.matmul %0, %1, %cst {dimension_numbers = #tpu.dot_dimension_numbers<[1], [0], [0], [1], [0, 0, 1, 1], [], []>} : vector<64x32xf32>, vector<32x32xf32>, vector<64x32xf32> -> vector<64x32xf32>
    %c0_3 = arith.constant 0 : index
    %c0_4 = arith.constant 0 : index
    %3 = vector.load %arg4[%c0_3, %c0_4] : memref<1x32xf32, #tpu.memory_space<vmem>>, vector<1x32xf32>
    %4 = vector.broadcast %3 : vector<1x32xf32> to vector<64x32xf32>
    %5 = arith.addf %2, %4 : vector<64x32xf32>
    %cst_5 = arith.constant 0.000000e+00 : f32
    %6 = vector.broadcast %cst_5 : f32 to vector<64x32xf32>
    %7 = arith.maximumf %5, %6 : vector<64x32xf32>
    %c0_6 = arith.constant 0 : index
    %c0_7 = arith.constant 0 : index
    %8 = vector.load %arg2[%c0_6, %c0_7] : memref<64x8xf32, #tpu.memory_space<vmem>>, vector<64x8xf32>
    %c0_8 = arith.constant 0 : index
    %c0_9 = arith.constant 0 : index
    %9 = vector.load %arg5[%c0_8, %c0_9] : memref<8x16xf32, #tpu.memory_space<vmem>>, vector<8x16xf32>
    %cst_10 = arith.constant dense<0.000000e+00> : vector<64x16xf32>
    %10 = tpu.matmul %8, %9, %cst_10 {dimension_numbers = #tpu.dot_dimension_numbers<[1], [0], [0], [1], [0, 0, 1, 1], [], []>} : vector<64x8xf32>, vector<8x16xf32>, vector<64x16xf32> -> vector<64x16xf32>
    %c0_11 = arith.constant 0 : index
    %c0_12 = arith.constant 0 : index
    %11 = vector.load %arg6[%c0_11, %c0_12] : memref<1x16xf32, #tpu.memory_space<vmem>>, vector<1x16xf32>
    %12 = vector.broadcast %11 : vector<1x16xf32> to vector<64x16xf32>
    %13 = arith.addf %10, %12 : vector<64x16xf32>
    %cst_13 = arith.constant 0.000000e+00 : f32
    %14 = vector.broadcast %cst_13 : f32 to vector<64x16xf32>
    %15 = arith.maximumf %13, %14 : vector<64x16xf32>
    %c0_14 = arith.constant 0 : index
    %c0_15 = arith.constant 0 : index
    %16 = vector.load %arg0[%c0_14, %c0_15] : memref<64x512xf32, #tpu.memory_space<vmem>>, vector<64x512xf32>
    %c0_16 = arith.constant 0 : index
    %c0_17 = arith.constant 0 : index
    %17 = vector.load %arg7[%c0_16, %c0_17] : memref<512x32xf32, #tpu.memory_space<vmem>>, vector<512x32xf32>
    %cst_18 = arith.constant dense<0.000000e+00> : vector<64x32xf32>
    %18 = tpu.matmul %16, %17, %cst_18 {dimension_numbers = #tpu.dot_dimension_numbers<[1], [0], [0], [1], [0, 0, 1, 1], [], []>} : vector<64x512xf32>, vector<512x32xf32>, vector<64x32xf32> -> vector<64x32xf32>
    %c0_19 = arith.constant 0 : index
    %c0_20 = arith.constant 0 : index
    %19 = vector.load %arg8[%c0_19, %c0_20] : memref<32x32xf32, #tpu.memory_space<vmem>>, vector<32x32xf32>
    %cst_21 = arith.constant dense<0.000000e+00> : vector<64x32xf32>
    %20 = tpu.matmul %7, %19, %cst_21 {dimension_numbers = #tpu.dot_dimension_numbers<[1], [0], [0], [1], [0, 0, 1, 1], [], []>} : vector<64x32xf32>, vector<32x32xf32>, vector<64x32xf32> -> vector<64x32xf32>
    %21 = arith.addf %18, %20 : vector<64x32xf32>
    %c0_22 = arith.constant 0 : index
    %c0_23 = arith.constant 0 : index
    %22 = vector.load %arg9[%c0_22, %c0_23] : memref<16x32xf32, #tpu.memory_space<vmem>>, vector<16x32xf32>
    %cst_24 = arith.constant dense<0.000000e+00> : vector<64x32xf32>
    %23 = tpu.matmul %15, %22, %cst_24 {dimension_numbers = #tpu.dot_dimension_numbers<[1], [0], [0], [1], [0, 0, 1, 1], [], []>} : vector<64x16xf32>, vector<16x32xf32>, vector<64x32xf32> -> vector<64x32xf32>
    %24 = arith.addf %21, %23 : vector<64x32xf32>
    %c0_25 = arith.constant 0 : index
    %c0_26 = arith.constant 0 : index
    %25 = vector.load %arg10[%c0_25, %c0_26] : memref<1x32xf32, #tpu.memory_space<vmem>>, vector<1x32xf32>
    %26 = vector.broadcast %25 : vector<1x32xf32> to vector<64x32xf32>
    %27 = arith.addf %24, %26 : vector<64x32xf32>
    %cst_27 = arith.constant 0.000000e+00 : f32
    %28 = vector.broadcast %cst_27 : f32 to vector<64x32xf32>
    %29 = arith.maximumf %27, %28 : vector<64x32xf32>
    %c0_28 = arith.constant 0 : index
    %c0_29 = arith.constant 0 : index
    %30 = vector.load %arg11[%c0_28, %c0_29] : memref<32x128xf32, #tpu.memory_space<vmem>>, vector<32x128xf32>
    %cst_30 = arith.constant dense<0.000000e+00> : vector<64x128xf32>
    %31 = tpu.matmul %29, %30, %cst_30 {dimension_numbers = #tpu.dot_dimension_numbers<[1], [0], [0], [1], [0, 0, 1, 1], [], []>} : vector<64x32xf32>, vector<32x128xf32>, vector<64x128xf32> -> vector<64x128xf32>
    %c0_31 = arith.constant 0 : index
    %c0_32 = arith.constant 0 : index
    %32 = vector.load %arg13[%c0_31, %c0_32] : memref<1x128xf32, #tpu.memory_space<vmem>>, vector<1x128xf32>
    %33 = vector.broadcast %32 : vector<1x128xf32> to vector<64x128xf32>
    %34 = arith.addf %31, %33 : vector<64x128xf32>
    %c0_33 = arith.constant 0 : index
    %c0_34 = arith.constant 0 : index
    %35 = vector.load %arg12[%c0_33, %c0_34] : memref<32x128xf32, #tpu.memory_space<vmem>>, vector<32x128xf32>
    %cst_35 = arith.constant 0.000000e+00 : f32
    %36 = vector.broadcast %cst_35 : f32 to vector<8x32xf32>
    %cst_36 = arith.constant 0.000000e+00 : f32
    %37 = vector.broadcast %cst_36 : f32 to vector<8x32xf32>
    %38 = vector.extract_strided_slice %34 {offsets = [0, 0], sizes = [8, 128], strides = [1, 1]} : vector<64x128xf32> to vector<8x128xf32>
    %cst_37 = arith.constant dense<0.000000e+00> : vector<8x128xf32>
    %39 = tpu.matmul %36, %35, %cst_37 {dimension_numbers = #tpu.dot_dimension_numbers<[1], [0], [0], [1], [0, 0, 1, 1], [], []>} : vector<8x32xf32>, vector<32x128xf32>, vector<8x128xf32> -> vector<8x128xf32>
    %40 = arith.addf %38, %39 : vector<8x128xf32>
    %41 = arith.negf %40 : vector<8x128xf32>
    %42 = math.exp %41 : vector<8x128xf32>
    %cst_38 = arith.constant 1.000000e+00 : f32
    %43 = vector.broadcast %cst_38 : f32 to vector<8x128xf32>
    %44 = arith.addf %43, %42 : vector<8x128xf32>
    %45 = arith.divf %43, %44 : vector<8x128xf32>
    %46 = vector.extract_strided_slice %45 {offsets = [0, 0], sizes = [8, 32], strides = [1, 1]} : vector<8x128xf32> to vector<8x32xf32>
    %47 = vector.extract_strided_slice %45 {offsets = [0, 32], sizes = [8, 32], strides = [1, 1]} : vector<8x128xf32> to vector<8x32xf32>
    %48 = vector.extract_strided_slice %45 {offsets = [0, 64], sizes = [8, 32], strides = [1, 1]} : vector<8x128xf32> to vector<8x32xf32>
    %cst_39 = arith.constant 2.000000e+00 : f32
    %49 = vector.broadcast %cst_39 : f32 to vector<8x32xf32>
    %50 = arith.mulf %49, %48 : vector<8x32xf32>
    %cst_40 = arith.constant 1.000000e+00 : f32
    %51 = vector.broadcast %cst_40 : f32 to vector<8x32xf32>
    %52 = arith.subf %50, %51 : vector<8x32xf32>
    %53 = vector.extract_strided_slice %45 {offsets = [0, 96], sizes = [8, 32], strides = [1, 1]} : vector<8x128xf32> to vector<8x32xf32>
    %54 = arith.mulf %47, %37 : vector<8x32xf32>
    %55 = arith.mulf %46, %52 : vector<8x32xf32>
    %56 = arith.addf %54, %55 : vector<8x32xf32>
    %57 = math.tanh %56 : vector<8x32xf32>
    %58 = arith.mulf %53, %57 : vector<8x32xf32>
    %59 = vector.extract_strided_slice %34 {offsets = [8, 0], sizes = [8, 128], strides = [1, 1]} : vector<64x128xf32> to vector<8x128xf32>
    %cst_41 = arith.constant dense<0.000000e+00> : vector<8x128xf32>
    %60 = tpu.matmul %58, %35, %cst_41 {dimension_numbers = #tpu.dot_dimension_numbers<[1], [0], [0], [1], [0, 0, 1, 1], [], []>} : vector<8x32xf32>, vector<32x128xf32>, vector<8x128xf32> -> vector<8x128xf32>
    %61 = arith.addf %59, %60 : vector<8x128xf32>
    %62 = arith.negf %61 : vector<8x128xf32>
    %63 = math.exp %62 : vector<8x128xf32>
    %cst_42 = arith.constant 1.000000e+00 : f32
    %64 = vector.broadcast %cst_42 : f32 to vector<8x128xf32>
    %65 = arith.addf %64, %63 : vector<8x128xf32>
    %66 = arith.divf %64, %65 : vector<8x128xf32>
    %67 = vector.extract_strided_slice %66 {offsets = [0, 0], sizes = [8, 32], strides = [1, 1]} : vector<8x128xf32> to vector<8x32xf32>
    %68 = vector.extract_strided_slice %66 {offsets = [0, 32], sizes = [8, 32], strides = [1, 1]} : vector<8x128xf32> to vector<8x32xf32>
    %69 = vector.extract_strided_slice %66 {offsets = [0, 64], sizes = [8, 32], strides = [1, 1]} : vector<8x128xf32> to vector<8x32xf32>
    %cst_43 = arith.constant 2.000000e+00 : f32
    %70 = vector.broadcast %cst_43 : f32 to vector<8x32xf32>
    %71 = arith.mulf %70, %69 : vector<8x32xf32>
    %cst_44 = arith.constant 1.000000e+00 : f32
    %72 = vector.broadcast %cst_44 : f32 to vector<8x32xf32>
    %73 = arith.subf %71, %72 : vector<8x32xf32>
    %74 = vector.extract_strided_slice %66 {offsets = [0, 96], sizes = [8, 32], strides = [1, 1]} : vector<8x128xf32> to vector<8x32xf32>
    %75 = arith.mulf %68, %56 : vector<8x32xf32>
    %76 = arith.mulf %67, %73 : vector<8x32xf32>
    %77 = arith.addf %75, %76 : vector<8x32xf32>
    %78 = math.tanh %77 : vector<8x32xf32>
    %79 = arith.mulf %74, %78 : vector<8x32xf32>
    %80 = vector.extract_strided_slice %34 {offsets = [16, 0], sizes = [8, 128], strides = [1, 1]} : vector<64x128xf32> to vector<8x128xf32>
    %cst_45 = arith.constant dense<0.000000e+00> : vector<8x128xf32>
    %81 = tpu.matmul %79, %35, %cst_45 {dimension_numbers = #tpu.dot_dimension_numbers<[1], [0], [0], [1], [0, 0, 1, 1], [], []>} : vector<8x32xf32>, vector<32x128xf32>, vector<8x128xf32> -> vector<8x128xf32>
    %82 = arith.addf %80, %81 : vector<8x128xf32>
    %83 = arith.negf %82 : vector<8x128xf32>
    %84 = math.exp %83 : vector<8x128xf32>
    %cst_46 = arith.constant 1.000000e+00 : f32
    %85 = vector.broadcast %cst_46 : f32 to vector<8x128xf32>
    %86 = arith.addf %85, %84 : vector<8x128xf32>
    %87 = arith.divf %85, %86 : vector<8x128xf32>
    %88 = vector.extract_strided_slice %87 {offsets = [0, 0], sizes = [8, 32], strides = [1, 1]} : vector<8x128xf32> to vector<8x32xf32>
    %89 = vector.extract_strided_slice %87 {offsets = [0, 32], sizes = [8, 32], strides = [1, 1]} : vector<8x128xf32> to vector<8x32xf32>
    %90 = vector.extract_strided_slice %87 {offsets = [0, 64], sizes = [8, 32], strides = [1, 1]} : vector<8x128xf32> to vector<8x32xf32>
    %cst_47 = arith.constant 2.000000e+00 : f32
    %91 = vector.broadcast %cst_47 : f32 to vector<8x32xf32>
    %92 = arith.mulf %91, %90 : vector<8x32xf32>
    %cst_48 = arith.constant 1.000000e+00 : f32
    %93 = vector.broadcast %cst_48 : f32 to vector<8x32xf32>
    %94 = arith.subf %92, %93 : vector<8x32xf32>
    %95 = vector.extract_strided_slice %87 {offsets = [0, 96], sizes = [8, 32], strides = [1, 1]} : vector<8x128xf32> to vector<8x32xf32>
    %96 = arith.mulf %89, %77 : vector<8x32xf32>
    %97 = arith.mulf %88, %94 : vector<8x32xf32>
    %98 = arith.addf %96, %97 : vector<8x32xf32>
    %99 = math.tanh %98 : vector<8x32xf32>
    %100 = arith.mulf %95, %99 : vector<8x32xf32>
    %101 = vector.extract_strided_slice %34 {offsets = [24, 0], sizes = [8, 128], strides = [1, 1]} : vector<64x128xf32> to vector<8x128xf32>
    %cst_49 = arith.constant dense<0.000000e+00> : vector<8x128xf32>
    %102 = tpu.matmul %100, %35, %cst_49 {dimension_numbers = #tpu.dot_dimension_numbers<[1], [0], [0], [1], [0, 0, 1, 1], [], []>} : vector<8x32xf32>, vector<32x128xf32>, vector<8x128xf32> -> vector<8x128xf32>
    %103 = arith.addf %101, %102 : vector<8x128xf32>
    %104 = arith.negf %103 : vector<8x128xf32>
    %105 = math.exp %104 : vector<8x128xf32>
    %cst_50 = arith.constant 1.000000e+00 : f32
    %106 = vector.broadcast %cst_50 : f32 to vector<8x128xf32>
    %107 = arith.addf %106, %105 : vector<8x128xf32>
    %108 = arith.divf %106, %107 : vector<8x128xf32>
    %109 = vector.extract_strided_slice %108 {offsets = [0, 0], sizes = [8, 32], strides = [1, 1]} : vector<8x128xf32> to vector<8x32xf32>
    %110 = vector.extract_strided_slice %108 {offsets = [0, 32], sizes = [8, 32], strides = [1, 1]} : vector<8x128xf32> to vector<8x32xf32>
    %111 = vector.extract_strided_slice %108 {offsets = [0, 64], sizes = [8, 32], strides = [1, 1]} : vector<8x128xf32> to vector<8x32xf32>
    %cst_51 = arith.constant 2.000000e+00 : f32
    %112 = vector.broadcast %cst_51 : f32 to vector<8x32xf32>
    %113 = arith.mulf %112, %111 : vector<8x32xf32>
    %cst_52 = arith.constant 1.000000e+00 : f32
    %114 = vector.broadcast %cst_52 : f32 to vector<8x32xf32>
    %115 = arith.subf %113, %114 : vector<8x32xf32>
    %116 = vector.extract_strided_slice %108 {offsets = [0, 96], sizes = [8, 32], strides = [1, 1]} : vector<8x128xf32> to vector<8x32xf32>
    %117 = arith.mulf %110, %98 : vector<8x32xf32>
    %118 = arith.mulf %109, %115 : vector<8x32xf32>
    %119 = arith.addf %117, %118 : vector<8x32xf32>
    %120 = math.tanh %119 : vector<8x32xf32>
    %121 = arith.mulf %116, %120 : vector<8x32xf32>
    %122 = vector.extract_strided_slice %34 {offsets = [32, 0], sizes = [8, 128], strides = [1, 1]} : vector<64x128xf32> to vector<8x128xf32>
    %cst_53 = arith.constant dense<0.000000e+00> : vector<8x128xf32>
    %123 = tpu.matmul %121, %35, %cst_53 {dimension_numbers = #tpu.dot_dimension_numbers<[1], [0], [0], [1], [0, 0, 1, 1], [], []>} : vector<8x32xf32>, vector<32x128xf32>, vector<8x128xf32> -> vector<8x128xf32>
    %124 = arith.addf %122, %123 : vector<8x128xf32>
    %125 = arith.negf %124 : vector<8x128xf32>
    %126 = math.exp %125 : vector<8x128xf32>
    %cst_54 = arith.constant 1.000000e+00 : f32
    %127 = vector.broadcast %cst_54 : f32 to vector<8x128xf32>
    %128 = arith.addf %127, %126 : vector<8x128xf32>
    %129 = arith.divf %127, %128 : vector<8x128xf32>
    %130 = vector.extract_strided_slice %129 {offsets = [0, 0], sizes = [8, 32], strides = [1, 1]} : vector<8x128xf32> to vector<8x32xf32>
    %131 = vector.extract_strided_slice %129 {offsets = [0, 32], sizes = [8, 32], strides = [1, 1]} : vector<8x128xf32> to vector<8x32xf32>
    %132 = vector.extract_strided_slice %129 {offsets = [0, 64], sizes = [8, 32], strides = [1, 1]} : vector<8x128xf32> to vector<8x32xf32>
    %cst_55 = arith.constant 2.000000e+00 : f32
    %133 = vector.broadcast %cst_55 : f32 to vector<8x32xf32>
    %134 = arith.mulf %133, %132 : vector<8x32xf32>
    %cst_56 = arith.constant 1.000000e+00 : f32
    %135 = vector.broadcast %cst_56 : f32 to vector<8x32xf32>
    %136 = arith.subf %134, %135 : vector<8x32xf32>
    %137 = vector.extract_strided_slice %129 {offsets = [0, 96], sizes = [8, 32], strides = [1, 1]} : vector<8x128xf32> to vector<8x32xf32>
    %138 = arith.mulf %131, %119 : vector<8x32xf32>
    %139 = arith.mulf %130, %136 : vector<8x32xf32>
    %140 = arith.addf %138, %139 : vector<8x32xf32>
    %141 = math.tanh %140 : vector<8x32xf32>
    %142 = arith.mulf %137, %141 : vector<8x32xf32>
    %143 = vector.extract_strided_slice %34 {offsets = [40, 0], sizes = [8, 128], strides = [1, 1]} : vector<64x128xf32> to vector<8x128xf32>
    %cst_57 = arith.constant dense<0.000000e+00> : vector<8x128xf32>
    %144 = tpu.matmul %142, %35, %cst_57 {dimension_numbers = #tpu.dot_dimension_numbers<[1], [0], [0], [1], [0, 0, 1, 1], [], []>} : vector<8x32xf32>, vector<32x128xf32>, vector<8x128xf32> -> vector<8x128xf32>
    %145 = arith.addf %143, %144 : vector<8x128xf32>
    %146 = arith.negf %145 : vector<8x128xf32>
    %147 = math.exp %146 : vector<8x128xf32>
    %cst_58 = arith.constant 1.000000e+00 : f32
    %148 = vector.broadcast %cst_58 : f32 to vector<8x128xf32>
    %149 = arith.addf %148, %147 : vector<8x128xf32>
    %150 = arith.divf %148, %149 : vector<8x128xf32>
    %151 = vector.extract_strided_slice %150 {offsets = [0, 0], sizes = [8, 32], strides = [1, 1]} : vector<8x128xf32> to vector<8x32xf32>
    %152 = vector.extract_strided_slice %150 {offsets = [0, 32], sizes = [8, 32], strides = [1, 1]} : vector<8x128xf32> to vector<8x32xf32>
    %153 = vector.extract_strided_slice %150 {offsets = [0, 64], sizes = [8, 32], strides = [1, 1]} : vector<8x128xf32> to vector<8x32xf32>
    %cst_59 = arith.constant 2.000000e+00 : f32
    %154 = vector.broadcast %cst_59 : f32 to vector<8x32xf32>
    %155 = arith.mulf %154, %153 : vector<8x32xf32>
    %cst_60 = arith.constant 1.000000e+00 : f32
    %156 = vector.broadcast %cst_60 : f32 to vector<8x32xf32>
    %157 = arith.subf %155, %156 : vector<8x32xf32>
    %158 = vector.extract_strided_slice %150 {offsets = [0, 96], sizes = [8, 32], strides = [1, 1]} : vector<8x128xf32> to vector<8x32xf32>
    %159 = arith.mulf %152, %140 : vector<8x32xf32>
    %160 = arith.mulf %151, %157 : vector<8x32xf32>
    %161 = arith.addf %159, %160 : vector<8x32xf32>
    %162 = math.tanh %161 : vector<8x32xf32>
    %163 = arith.mulf %158, %162 : vector<8x32xf32>
    %164 = vector.extract_strided_slice %34 {offsets = [48, 0], sizes = [8, 128], strides = [1, 1]} : vector<64x128xf32> to vector<8x128xf32>
    %cst_61 = arith.constant dense<0.000000e+00> : vector<8x128xf32>
    %165 = tpu.matmul %163, %35, %cst_61 {dimension_numbers = #tpu.dot_dimension_numbers<[1], [0], [0], [1], [0, 0, 1, 1], [], []>} : vector<8x32xf32>, vector<32x128xf32>, vector<8x128xf32> -> vector<8x128xf32>
    %166 = arith.addf %164, %165 : vector<8x128xf32>
    %167 = arith.negf %166 : vector<8x128xf32>
    %168 = math.exp %167 : vector<8x128xf32>
    %cst_62 = arith.constant 1.000000e+00 : f32
    %169 = vector.broadcast %cst_62 : f32 to vector<8x128xf32>
    %170 = arith.addf %169, %168 : vector<8x128xf32>
    %171 = arith.divf %169, %170 : vector<8x128xf32>
    %172 = vector.extract_strided_slice %171 {offsets = [0, 0], sizes = [8, 32], strides = [1, 1]} : vector<8x128xf32> to vector<8x32xf32>
    %173 = vector.extract_strided_slice %171 {offsets = [0, 32], sizes = [8, 32], strides = [1, 1]} : vector<8x128xf32> to vector<8x32xf32>
    %174 = vector.extract_strided_slice %171 {offsets = [0, 64], sizes = [8, 32], strides = [1, 1]} : vector<8x128xf32> to vector<8x32xf32>
    %cst_63 = arith.constant 2.000000e+00 : f32
    %175 = vector.broadcast %cst_63 : f32 to vector<8x32xf32>
    %176 = arith.mulf %175, %174 : vector<8x32xf32>
    %cst_64 = arith.constant 1.000000e+00 : f32
    %177 = vector.broadcast %cst_64 : f32 to vector<8x32xf32>
    %178 = arith.subf %176, %177 : vector<8x32xf32>
    %179 = vector.extract_strided_slice %171 {offsets = [0, 96], sizes = [8, 32], strides = [1, 1]} : vector<8x128xf32> to vector<8x32xf32>
    %180 = arith.mulf %173, %161 : vector<8x32xf32>
    %181 = arith.mulf %172, %178 : vector<8x32xf32>
    %182 = arith.addf %180, %181 : vector<8x32xf32>
    %183 = math.tanh %182 : vector<8x32xf32>
    %184 = arith.mulf %179, %183 : vector<8x32xf32>
    %185 = vector.extract_strided_slice %34 {offsets = [56, 0], sizes = [8, 128], strides = [1, 1]} : vector<64x128xf32> to vector<8x128xf32>
    %cst_65 = arith.constant dense<0.000000e+00> : vector<8x128xf32>
    %186 = tpu.matmul %184, %35, %cst_65 {dimension_numbers = #tpu.dot_dimension_numbers<[1], [0], [0], [1], [0, 0, 1, 1], [], []>} : vector<8x32xf32>, vector<32x128xf32>, vector<8x128xf32> -> vector<8x128xf32>
    %187 = arith.addf %185, %186 : vector<8x128xf32>
    %188 = arith.negf %187 : vector<8x128xf32>
    %189 = math.exp %188 : vector<8x128xf32>
    %cst_66 = arith.constant 1.000000e+00 : f32
    %190 = vector.broadcast %cst_66 : f32 to vector<8x128xf32>
    %191 = arith.addf %190, %189 : vector<8x128xf32>
    %192 = arith.divf %190, %191 : vector<8x128xf32>
    %193 = vector.extract_strided_slice %192 {offsets = [0, 0], sizes = [8, 32], strides = [1, 1]} : vector<8x128xf32> to vector<8x32xf32>
    %194 = vector.extract_strided_slice %192 {offsets = [0, 32], sizes = [8, 32], strides = [1, 1]} : vector<8x128xf32> to vector<8x32xf32>
    %195 = vector.extract_strided_slice %192 {offsets = [0, 64], sizes = [8, 32], strides = [1, 1]} : vector<8x128xf32> to vector<8x32xf32>
    %cst_67 = arith.constant 2.000000e+00 : f32
    %196 = vector.broadcast %cst_67 : f32 to vector<8x32xf32>
    %197 = arith.mulf %196, %195 : vector<8x32xf32>
    %cst_68 = arith.constant 1.000000e+00 : f32
    %198 = vector.broadcast %cst_68 : f32 to vector<8x32xf32>
    %199 = arith.subf %197, %198 : vector<8x32xf32>
    %200 = vector.extract_strided_slice %192 {offsets = [0, 96], sizes = [8, 32], strides = [1, 1]} : vector<8x128xf32> to vector<8x32xf32>
    %201 = arith.mulf %194, %182 : vector<8x32xf32>
    %202 = arith.mulf %193, %199 : vector<8x32xf32>
    %203 = arith.addf %201, %202 : vector<8x32xf32>
    %204 = math.tanh %203 : vector<8x32xf32>
    %205 = arith.mulf %200, %204 : vector<8x32xf32>
    %c0_69 = arith.constant 0 : index
    %c0_70 = arith.constant 0 : index
    %206 = vector.load %arg19[%c0_69, %c0_70] : memref<8x32xf32, #tpu.memory_space<vmem>>, vector<8x32xf32>
    tpu.vector_store %arg19[%c0_69, %c0_70], %205 {strides = array<i32>} : memref<8x32xf32, #tpu.memory_space<vmem>>, vector<8x32xf32>,
    %c0_71 = arith.constant 0 : index
    %c0_72 = arith.constant 0 : index
    %207 = vector.load %arg20[%c0_71, %c0_72] : memref<8x32xf32, #tpu.memory_space<vmem>>, vector<8x32xf32>
    tpu.vector_store %arg20[%c0_71, %c0_72], %203 {strides = array<i32>} : memref<8x32xf32, #tpu.memory_space<vmem>>, vector<8x32xf32>,
    %208 = tpu.concatenate %58, %79, %100, %121, %142, %163, %184, %205 in 0 : vector<8x32xf32>, vector<8x32xf32>, vector<8x32xf32>, vector<8x32xf32>, vector<8x32xf32>, vector<8x32xf32>, vector<8x32xf32>, vector<8x32xf32> -> vector<64x32xf32>
    %c0_73 = arith.constant 0 : index
    %c0_74 = arith.constant 0 : index
    %209 = vector.load %arg14[%c0_73, %c0_74] : memref<32x256xf32, #tpu.memory_space<vmem>>, vector<32x256xf32>
    %cst_75 = arith.constant dense<0.000000e+00> : vector<64x256xf32>
    %210 = tpu.matmul %208, %209, %cst_75 {dimension_numbers = #tpu.dot_dimension_numbers<[1], [0], [0], [1], [0, 0, 1, 1], [], []>} : vector<64x32xf32>, vector<32x256xf32>, vector<64x256xf32> -> vector<64x256xf32>
    %c0_76 = arith.constant 0 : index
    %c0_77 = arith.constant 0 : index
    %211 = vector.load %arg15[%c0_76, %c0_77] : memref<1x256xf32, #tpu.memory_space<vmem>>, vector<1x256xf32>
    %212 = vector.broadcast %211 : vector<1x256xf32> to vector<64x256xf32>
    %213 = arith.addf %210, %212 : vector<64x256xf32>
    %cst_78 = arith.constant 0.000000e+00 : f32
    %214 = vector.broadcast %cst_78 : f32 to vector<64x256xf32>
    %215 = arith.maximumf %213, %214 : vector<64x256xf32>
    %c0_79 = arith.constant 0 : index
    %c0_80 = arith.constant 0 : index
    %216 = vector.load %arg16[%c0_79, %c0_80] : memref<256x128xf32, #tpu.memory_space<vmem>>, vector<256x128xf32>
    %cst_81 = arith.constant dense<0.000000e+00> : vector<64x128xf32>
    %217 = tpu.matmul %215, %216, %cst_81 {dimension_numbers = #tpu.dot_dimension_numbers<[1], [0], [0], [1], [0, 0, 1, 1], [], []>} : vector<64x256xf32>, vector<256x128xf32>, vector<64x128xf32> -> vector<64x128xf32>
    %c0_82 = arith.constant 0 : index
    %c0_83 = arith.constant 0 : index
    %218 = vector.load %arg17[%c0_82, %c0_83] : memref<1x128xf32, #tpu.memory_space<vmem>>, vector<1x128xf32>
    %219 = vector.broadcast %218 : vector<1x128xf32> to vector<64x128xf32>
    %220 = arith.addf %217, %219 : vector<64x128xf32>
    %cst_84 = arith.constant 0.000000e+00 : f32
    %221 = vector.broadcast %cst_84 : f32 to vector<64x128xf32>
    %222 = arith.maximumf %220, %221 : vector<64x128xf32>
    %c0_85 = arith.constant 0 : index
    %c0_86 = arith.constant 0 : index
    %223 = vector.load %arg18[%c0_85, %c0_86] : memref<64x128xf32, #tpu.memory_space<vmem>>, vector<64x128xf32>
    tpu.vector_store %arg18[%c0_85, %c0_86], %222 {strides = array<i32>} : memref<64x128xf32, #tpu.memory_space<vmem>>, vector<64x128xf32>,
    return
  }
}

</mosaic_0001>

<llo_original>
// kernel: base_model_forward.1
$region0: #{base_model_forward.1}
  #allocation0 [shape = 'u32[]', space=smem, size = 0x4, offset = 0x4, fixed_abs, tag = 'smem constant byte address 0x4 - core index']
  #allocation1 [shape = 'u32[144,128]{1,0:T(1,128)}', space=vmem, size = 0x12000, scoped, tag = 'internal scratch']
  %s0 = inlined_call_operand.vmem [shape: f32[64,512], index: 0, kind: input, shape index: {}]
  %s1 = inlined_call_operand.vmem [shape: f32[64,32], index: 1, kind: input, shape index: {}]
  %s2 = inlined_call_operand.vmem [shape: f32[64,8], index: 2, kind: input, shape index: {}]
  %s3 = inlined_call_operand.vmem [shape: f32[32,32], index: 3, kind: input, shape index: {}]
  %s4 = inlined_call_operand.vmem [shape: f32[1,32], index: 4, kind: input, shape index: {}]
  %s5 = inlined_call_operand.vmem [shape: f32[8,16], index: 5, kind: input, shape index: {}]
  %s6 = inlined_call_operand.vmem [shape: f32[1,16], index: 6, kind: input, shape index: {}]
  %s7 = inlined_call_operand.vmem [shape: f32[512,32], index: 7, kind: input, shape index: {}]
  %s8 = inlined_call_operand.vmem [shape: f32[32,32], index: 8, kind: input, shape index: {}]
  %s9 = inlined_call_operand.vmem [shape: f32[16,32], index: 9, kind: input, shape index: {}]
  %s10 = inlined_call_operand.vmem [shape: f32[1,32], index: 10, kind: input, shape index: {}]
  %s11 = inlined_call_operand.vmem [shape: f32[32,128], index: 11, kind: input, shape index: {}]
  %s12 = inlined_call_operand.vmem [shape: f32[32,128], index: 12, kind: input, shape index: {}]
  %s13 = inlined_call_operand.vmem [shape: f32[1,128], index: 13, kind: input, shape index: {}]
  %s14 = inlined_call_operand.vmem [shape: f32[32,256], index: 14, kind: input, shape index: {}]
  %s15 = inlined_call_operand.vmem [shape: f32[1,256], index: 15, kind: input, shape index: {}]
  %s16 = inlined_call_operand.vmem [shape: f32[256,128], index: 16, kind: input, shape index: {}]
  %s17 = inlined_call_operand.vmem [shape: f32[1,128], index: 17, kind: input, shape index: {}]
  %s18 = inlined_call_operand.vmem [shape: f32[64,128], index: 18, kind: output, shape index: {0}]
  %s19 = inlined_call_operand.vmem [shape: f32[8,32], index: 19, kind: output, shape index: {1}]
  %s20 = inlined_call_operand.vmem [shape: f32[8,32], index: 20, kind: output, shape index: {2}]
  %21 = xla_tuple %s18, %s19, %s20
  %s22 = sld [smem:[#allocation0]]
  $region98: #{base_model_forward.1} parent=0
    _
  %s24 = ssub.s32 1, %s22
  %s25 = scalar_select 0, %s24, %s22
  // Predicated region
  $region2: #{base_model_forward.1} parent=0 // pred_check
    _
  $region3: #{base_model_forward.1} parent=0 // pred_check_branch
    %27 = sbr.rel (0) target = $region5
  $region4: #{base_model_forward.1} parent=0 // pred_region
    _
  $region5: #{base_model_forward.1} parent=0 // pred_fallthru
    _
  // Predicated region
  $region6: #{base_model_forward.1} parent=0 // pred_check
    _
  $region7: #{base_model_forward.1} parent=0 // pred_check_branch
    %29 = sbr.rel (0) target = $region9
  $region8: #{base_model_forward.1} parent=0 // pred_region
    _
  $region9: #{base_model_forward.1} parent=0 // pred_fallthru
    _
  // Predicated region
  $region10: #{base_model_forward.1} parent=0 // pred_check
    _
  $region11: #{base_model_forward.1} parent=0 // pred_check_branch
    %31 = sbr.rel (0) target = $region13
  $region12: #{base_model_forward.1} parent=0 // pred_region
    _
  $region13: #{base_model_forward.1} parent=0 // pred_fallthru
    _
  // Predicated region
  $region14: #{base_model_forward.1} parent=0 // pred_check
    _
  $region15: #{base_model_forward.1} parent=0 // pred_check_branch
    %33 = sbr.rel (0) target = $region17
  $region16: #{base_model_forward.1} parent=0 // pred_region
    _
  $region17: #{base_model_forward.1} parent=0 // pred_fallthru
    _
  // Predicated region
  $region18: #{base_model_forward.1} parent=0 // pred_check
    _
  $region19: #{base_model_forward.1} parent=0 // pred_check_branch
    %35 = sbr.rel (0) target = $region21
  $region20: #{base_model_forward.1} parent=0 // pred_region
    _
  $region21: #{base_model_forward.1} parent=0 // pred_fallthru
    _
  // Predicated region
  $region22: #{base_model_forward.1} parent=0 // pred_check
    _
  $region23: #{base_model_forward.1} parent=0 // pred_check_branch
    %37 = sbr.rel (0) target = $region25
  $region24: #{base_model_forward.1} parent=0 // pred_region
    _
  $region25: #{base_model_forward.1} parent=0 // pred_fallthru
    _
  // Predicated region
  $region26: #{base_model_forward.1} parent=0 // pred_check
    _
  $region27: #{base_model_forward.1} parent=0 // pred_check_branch
    %39 = sbr.rel (0) target = $region29
  $region28: #{base_model_forward.1} parent=0 // pred_region
    _
  $region29: #{base_model_forward.1} parent=0 // pred_fallthru
    _
  // Predicated region
  $region30: #{base_model_forward.1} parent=0 // pred_check
    _
  $region31: #{base_model_forward.1} parent=0 // pred_check_branch
    %41 = sbr.rel (0) target = $region33
  $region32: #{base_model_forward.1} parent=0 // pred_region
    _
  $region33: #{base_model_forward.1} parent=0 // pred_fallthru
    _
  // Predicated region
  $region34: #{base_model_forward.1} parent=0 // pred_check
    _
  $region35: #{base_model_forward.1} parent=0 // pred_check_branch
    %43 = sbr.rel (0) target = $region37
  $region36: #{base_model_forward.1} parent=0 // pred_region
    _
  $region37: #{base_model_forward.1} parent=0 // pred_fallthru
    _
  // Predicated region
  $region38: #{base_model_forward.1} parent=0 // pred_check
    _
  $region39: #{base_model_forward.1} parent=0 // pred_check_branch
    %45 = sbr.rel (0) target = $region41
  $region40: #{base_model_forward.1} parent=0 // pred_region
    _
  $region41: #{base_model_forward.1} parent=0 // pred_fallthru
    _
  // Predicated region
  $region42: #{base_model_forward.1} parent=0 // pred_check
    _
  $region43: #{base_model_forward.1} parent=0 // pred_check_branch
    %47 = sbr.rel (0) target = $region45
  $region44: #{base_model_forward.1} parent=0 // pred_region
    _
  $region45: #{base_model_forward.1} parent=0 // pred_fallthru
    _
  // Predicated region
  $region46: #{base_model_forward.1} parent=0 // pred_check
    _
  $region47: #{base_model_forward.1} parent=0 // pred_check_branch
    %49 = sbr.rel (0) target = $region49
  $region48: #{base_model_forward.1} parent=0 // pred_region
    _
  $region49: #{base_model_forward.1} parent=0 // pred_fallthru
    _
  // Predicated region
  $region50: #{base_model_forward.1} parent=0 // pred_check
    _
  $region51: #{base_model_forward.1} parent=0 // pred_check_branch
    %51 = sbr.rel (0) target = $region53
  $region52: #{base_model_forward.1} parent=0 // pred_region
    _
  $region53: #{base_model_forward.1} parent=0 // pred_fallthru
    _
  // Predicated region
  $region54: #{base_model_forward.1} parent=0 // pred_check
    _
  $region55: #{base_model_forward.1} parent=0 // pred_check_branch
    %53 = sbr.rel (0) target = $region57
  $region56: #{base_model_forward.1} parent=0 // pred_region
    _
  $region57: #{base_model_forward.1} parent=0 // pred_fallthru
    _
  // Predicated region
  $region58: #{base_model_forward.1} parent=0 // pred_check
    _
  $region59: #{base_model_forward.1} parent=0 // pred_check_branch
    %55 = sbr.rel (0) target = $region61
  $region60: #{base_model_forward.1} parent=0 // pred_region
    _
  $region61: #{base_model_forward.1} parent=0 // pred_fallthru
    _
  // Predicated region
  $region62: #{base_model_forward.1} parent=0 // pred_check
    _
  $region63: #{base_model_forward.1} parent=0 // pred_check_branch
    %57 = sbr.rel (0) target = $region65
  $region64: #{base_model_forward.1} parent=0 // pred_region
    _
  $region65: #{base_model_forward.1} parent=0 // pred_fallthru
    _
  // Predicated region
  $region66: #{base_model_forward.1} parent=0 // pred_check
    _
  $region67: #{base_model_forward.1} parent=0 // pred_check_branch
    %59 = sbr.rel (0) target = $region69
  $region68: #{base_model_forward.1} parent=0 // pred_region
    _
  $region69: #{base_model_forward.1} parent=0 // pred_fallthru
    _
  // Predicated region
  $region70: #{base_model_forward.1} parent=0 // pred_check
    _
  $region71: #{base_model_forward.1} parent=0 // pred_check_branch
    %61 = sbr.rel (0) target = $region73
  $region72: #{base_model_forward.1} parent=0 // pred_region
    _
  $region73: #{base_model_forward.1} parent=0 // pred_fallthru
    _
  %v62 = vld [vmem:[%s1] sm:$0xff]
  %v63 = vld [vmem:[%s1 + $0x8] sm:$0xff]
  %v64 = vld [vmem:[%s1 + $0x10] sm:$0xff]
  %v65 = vld [vmem:[%s1 + $0x18] sm:$0xff]
  %v66 = vld [vmem:[%s1 + $0x20] sm:$0xff]
  %v67 = vld [vmem:[%s1 + $0x28] sm:$0xff]
  %v68 = vld [vmem:[%s1 + $0x30] sm:$0xff]
  %v69 = vld [vmem:[%s1 + $0x38] sm:$0xff]
  %v70 = vld [vmem:[%s3] sm:$0xff]
  %v71 = vld [vmem:[%s3 + $0x8] sm:$0xff]
  %v72 = vld [vmem:[%s3 + $0x10] sm:$0xff]
  %v73 = vld [vmem:[%s3 + $0x18] sm:$0xff]
  %v74 = vld [vmem:[%s4] sm:$0x1]
  %v76 = vlaneseq
  %v77 = vshrl.u32 %v76, 7
  %v78 = vsub.s32 0, %v77
  %v79 = vrot.slane %v74, %v78
  %vm81 = vcmask 261120
  %v83 = vsel %vm81, %v62, 0
  %v86 = vsel %vm81, %v63, 0
  %v89 = vsel %vm81, %v64, 0
  %v92 = vsel %vm81, %v65, 0
  %v95 = vsel %vm81, %v66, 0
  %v98 = vsel %vm81, %v67, 0
  %v101 = vsel %vm81, %v68, 0
  %v104 = vsel %vm81, %v69, 0
  %106 = vmatprep.subr.mxu0 0.0
  %107 = vmatpush1.msra.mxu0 %v70
  %108 = vmatprep.subr.mxu0 0.0
  %109 = vmatpush1.msra.mxu0 %v71
  %110 = vmatprep.subr.mxu0 0.0
  %111 = vmatpush1.msra.mxu0 %v72
  %112 = vmatprep.subr.mxu0 0.0
  %113 = vmatpush1.msra.mxu0 %v73
  %114 = vmatprep.subr.mxu0 0.0
  %115 = vmatpush1.msra.mxu0 0.0
  %116 = vmatprep.subr.mxu0 0.0
  %117 = vmatpush1.msra.mxu0 0.0
  %118 = vmatprep.subr.mxu0 0.0
  %119 = vmatpush1.msra.mxu0 0.0
  %120 = vmatprep.subr.mxu0 0.0
  %121 = vmatpush1.msra.mxu0 0.0
  %122 = vmatprep.subr.mxu0 0.0
  %123 = vmatpush1.msra.mxu0 0.0
  %124 = vmatprep.subr.mxu0 0.0
  %125 = vmatpush1.msra.mxu0 0.0
  %126 = vmatprep.subr.mxu0 0.0
  %127 = vmatpush1.msra.mxu0 0.0
  %128 = vmatprep.subr.mxu0 0.0
  %129 = vmatpush1.msra.mxu0 0.0
  %130 = vmatprep.subr.mxu0 0.0
  %131 = vmatpush1.msra.mxu0 0.0
  %132 = vmatprep.subr.mxu0 0.0
  %133 = vmatpush1.msra.mxu0 0.0
  %134 = vmatprep.subr.mxu0 0.0
  %135 = vmatpush1.msra.mxu0 0.0
  %136 = vmatprep.subr.mxu0 0.0
  %137 = vmatpush1.msra.mxu0 0.0
  %138 = vmatprep.subr.mxu0 0.0
  %139 = vmatpush1.msra.mxu0 0.0
  %140 = vmatprep.subr.mxu0 0.0
  %141 = vmatpush1.msra.mxu0 0.0
  %142 = vmatprep.subr.mxu0 0.0
  %143 = vmatpush1.msra.mxu0 0.0
  %144 = vmatprep.subr.mxu0 0.0
  %145 = vmatpush1.msra.mxu0 0.0
  %146 = vmatprep.subr.mxu0 0.0
  %147 = vmatpush1.msra.mxu0 0.0
  %148 = vmatprep.subr.mxu0 0.0
  %149 = vmatpush1.msra.mxu0 0.0
  %150 = vmatprep.subr.mxu0 0.0
  %151 = vmatpush1.msra.mxu0 0.0
  %152 = vmatprep.subr.mxu0 0.0
  %153 = vmatpush1.msra.mxu0 0.0
  %154 = vmatprep.subr.mxu0 0.0
  %155 = vmatpush1.msra.mxu0 0.0
  %156 = vmatprep.subr.mxu0 0.0
  %157 = vmatpush1.msra.mxu0 0.0
  %158 = vmatprep.subr.mxu0 0.0
  %159 = vmatpush1.msra.mxu0 0.0
  %160 = vmatprep.subr.mxu0 0.0
  %161 = vmatpush1.msra.mxu0 0.0
  %162 = vmatprep.subr.mxu0 0.0
  %163 = vmatpush1.msra.mxu0 0.0
  %164 = vmatprep.subr.mxu0 0.0
  %165 = vmatpush1.msra.mxu0 0.0
  %166 = vmatprep.subr.mxu0 0.0
  %167 = vmatpush1.msra.mxu0 0.0
  %168 = vmatprep.subr.mxu0 0.0
  %169 = vmatpush1.msra.mxu0 0.0
  %170 = vmatprep.mubr.f32.mxu0 0.0
  %171 = vmatmul.mubr.f32.gmra.mrb[0].mxu0 %v83
  %v172 = vpop.f32.mrb[0].mxu0
  %v173 = vadd.f32 %v79, %v172
  %v174 = vpop.f32.mrb[0].mxu0
  %175 = vmatprep.mubr.f32.mxu0 0.0
  %176 = vmatmul.mubr.f32.gmra.mrb[0].mxu0 %v86
  %v177 = vpop.f32.mrb[0].mxu0
  %v178 = vadd.f32 %v79, %v177
  %v179 = vpop.f32.mrb[0].mxu0
  %180 = vmatprep.mubr.f32.mxu0 0.0
  %181 = vmatmul.mubr.f32.gmra.mrb[0].mxu0 %v89
  %v182 = vpop.f32.mrb[0].mxu0
  %v183 = vadd.f32 %v79, %v182
  %v184 = vpop.f32.mrb[0].mxu0
  %185 = vmatprep.mubr.f32.mxu0 0.0
  %186 = vmatmul.mubr.f32.gmra.mrb[0].mxu0 %v92
  %v187 = vpop.f32.mrb[0].mxu0
  %v188 = vadd.f32 %v79, %v187
  %v189 = vpop.f32.mrb[0].mxu0
  %190 = vmatprep.mubr.f32.mxu0 0.0
  %191 = vmatmul.mubr.f32.gmra.mrb[0].mxu0 %v95
  %v192 = vpop.f32.mrb[0].mxu0
  %v193 = vadd.f32 %v79, %v192
  %v194 = vpop.f32.mrb[0].mxu0
  %195 = vmatprep.mubr.f32.mxu0 0.0
  %196 = vmatmul.mubr.f32.gmra.mrb[0].mxu0 %v98
  %v197 = vpop.f32.mrb[0].mxu0
  %v198 = vadd.f32 %v79, %v197
  %v199 = vpop.f32.mrb[0].mxu0
  %200 = vmatprep.mubr.f32.mxu0 0.0
  %201 = vmatmul.mubr.f32.gmra.mrb[0].mxu0 %v101
  %v202 = vpop.f32.mrb[0].mxu0
  %v203 = vadd.f32 %v79, %v202
  %v204 = vpop.f32.mrb[0].mxu0
  %205 = vmatprep.mubr.f32.mxu0 0.0
  %206 = vmatmul.mubr.f32.gmra.mrb[0].mxu0 %v104
  %v207 = vpop.f32.mrb[0].mxu0
  %v208 = vadd.f32 %v79, %v207
  %v209 = vpop.f32.mrb[0].mxu0
  %210 = vdwg.mxu0
  %v211 = vmax.f32 %v173, 0.0
  %v212 = vmax.f32 %v178, 0.0
  %v213 = vmax.f32 %v183, 0.0
  %v214 = vmax.f32 %v188, 0.0
  %v215 = vmax.f32 %v193, 0.0
  %v216 = vmax.f32 %v198, 0.0
  %v217 = vmax.f32 %v203, 0.0
  %v218 = vmax.f32 %v208, 0.0
  %v219 = vld [vmem:[%s2] sm:$0xff]
  %v220 = vld [vmem:[%s2 + $0x8] sm:$0xff]
  %v221 = vld [vmem:[%s2 + $0x10] sm:$0xff]
  %v222 = vld [vmem:[%s2 + $0x18] sm:$0xff]
  %v223 = vld [vmem:[%s2 + $0x20] sm:$0xff]
  %v224 = vld [vmem:[%s2 + $0x28] sm:$0xff]
  %v225 = vld [vmem:[%s2 + $0x30] sm:$0xff]
  %v226 = vld [vmem:[%s2 + $0x38] sm:$0xff]
  %v227 = vld [vmem:[%s5] sm:$0xff]
  %v228 = vld [vmem:[%s6] sm:$0x1]
  %v230 = vlaneseq
  %v231 = vshrl.u32 %v230, 7
  %v232 = vsub.s32 0, %v231
  %v233 = vrot.slane %v228, %v232
  %vm235 = vcmask 64512
  %v237 = vsel %vm235, %v219, 0
  %v240 = vsel %vm235, %v220, 0
  %v243 = vsel %vm235, %v221, 0
  %v246 = vsel %vm235, %v222, 0
  %v249 = vsel %vm235, %v223, 0
  %v252 = vsel %vm235, %v224, 0
  %v255 = vsel %vm235, %v225, 0
  %v258 = vsel %vm235, %v226, 0
  %260 = vmatprep.subr.mxu0 0.0
  %261 = vmatpush1.msra.mxu0 %v227
  %262 = vmatprep.subr.mxu0 0.0
  %263 = vmatpush1.msra.mxu0 0.0
  %264 = vmatprep.subr.mxu0 0.0
  %265 = vmatpush1.msra.mxu0 0.0
  %266 = vmatprep.subr.mxu0 0.0
  %267 = vmatpush1.msra.mxu0 0.0
  %268 = vmatprep.subr.mxu0 0.0
  %269 = vmatpush1.msra.mxu0 0.0
  %270 = vmatprep.subr.mxu0 0.0
  %271 = vmatpush1.msra.mxu0 0.0
  %272 = vmatprep.subr.mxu0 0.0
  %273 = vmatpush1.msra.mxu0 0.0
  %274 = vmatprep.subr.mxu0 0.0
  %275 = vmatpush1.msra.mxu0 0.0
  %276 = vmatprep.subr.mxu0 0.0
  %277 = vmatpush1.msra.mxu0 0.0
  %278 = vmatprep.subr.mxu0 0.0
  %279 = vmatpush1.msra.mxu0 0.0
  %280 = vmatprep.subr.mxu0 0.0
  %281 = vmatpush1.msra.mxu0 0.0
  %282 = vmatprep.subr.mxu0 0.0
  %283 = vmatpush1.msra.mxu0 0.0
  %284 = vmatprep.subr.mxu0 0.0
  %285 = vmatpush1.msra.mxu0 0.0
  %286 = vmatprep.subr.mxu0 0.0
  %287 = vmatpush1.msra.mxu0 0.0
  %288 = vmatprep.subr.mxu0 0.0
  %289 = vmatpush1.msra.mxu0 0.0
  %290 = vmatprep.subr.mxu0 0.0
  %291 = vmatpush1.msra.mxu0 0.0
  %292 = vmatprep.subr.mxu0 0.0
  %293 = vmatpush1.msra.mxu0 0.0
  %294 = vmatprep.subr.mxu0 0.0
  %295 = vmatpush1.msra.mxu0 0.0
  %296 = vmatprep.subr.mxu0 0.0
  %297 = vmatpush1.msra.mxu0 0.0
  %298 = vmatprep.subr.mxu0 0.0
  %299 = vmatpush1.msra.mxu0 0.0
  %300 = vmatprep.subr.mxu0 0.0
  %301 = vmatpush1.msra.mxu0 0.0
  %302 = vmatprep.subr.mxu0 0.0
  %303 = vmatpush1.msra.mxu0 0.0
  %304 = vmatprep.subr.mxu0 0.0
  %305 = vmatpush1.msra.mxu0 0.0
  %306 = vmatprep.subr.mxu0 0.0
  %307 = vmatpush1.msra.mxu0 0.0
  %308 = vmatprep.subr.mxu0 0.0
  %309 = vmatpush1.msra.mxu0 0.0
  %310 = vmatprep.subr.mxu0 0.0
  %311 = vmatpush1.msra.mxu0 0.0
  %312 = vmatprep.subr.mxu0 0.0
  %313 = vmatpush1.msra.mxu0 0.0
  %314 = vmatprep.subr.mxu0 0.0
  %315 = vmatpush1.msra.mxu0 0.0
  %316 = vmatprep.subr.mxu0 0.0
  %317 = vmatpush1.msra.mxu0 0.0
  %318 = vmatprep.subr.mxu0 0.0
  %319 = vmatpush1.msra.mxu0 0.0
  %320 = vmatprep.subr.mxu0 0.0
  %321 = vmatpush1.msra.mxu0 0.0
  %322 = vmatprep.subr.mxu0 0.0
  %323 = vmatpush1.msra.mxu0 0.0
  %324 = vmatprep.mubr.f32.mxu0 0.0
  %325 = vmatmul.mubr.f32.gmra.mrb[0].mxu0 %v237
  %v326 = vpop.f32.mrb[0].mxu0
  %v327 = vadd.f32 %v233, %v326
  %v328 = vpop.f32.mrb[0].mxu0
  %329 = vmatprep.mubr.f32.mxu0 0.0
  %330 = vmatmul.mubr.f32.gmra.mrb[0].mxu0 %v240
  %v331 = vpop.f32.mrb[0].mxu0
  %v332 = vadd.f32 %v233, %v331
  %v333 = vpop.f32.mrb[0].mxu0
  %334 = vmatprep.mubr.f32.mxu0 0.0
  %335 = vmatmul.mubr.f32.gmra.mrb[0].mxu0 %v243
  %v336 = vpop.f32.mrb[0].mxu0
  %v337 = vadd.f32 %v233, %v336
  %v338 = vpop.f32.mrb[0].mxu0
  %339 = vmatprep.mubr.f32.mxu0 0.0
  %340 = vmatmul.mubr.f32.gmra.mrb[0].mxu0 %v246
  %v341 = vpop.f32.mrb[0].mxu0
  %v342 = vadd.f32 %v233, %v341
  %v343 = vpop.f32.mrb[0].mxu0
  %344 = vmatprep.mubr.f32.mxu0 0.0
  %345 = vmatmul.mubr.f32.gmra.mrb[0].mxu0 %v249
  %v346 = vpop.f32.mrb[0].mxu0
  %v347 = vadd.f32 %v233, %v346
  %v348 = vpop.f32.mrb[0].mxu0
  %349 = vmatprep.mubr.f32.mxu0 0.0
  %350 = vmatmul.mubr.f32.gmra.mrb[0].mxu0 %v252
  %v351 = vpop.f32.mrb[0].mxu0
  %v352 = vadd.f32 %v233, %v351
  %v353 = vpop.f32.mrb[0].mxu0
  %354 = vmatprep.mubr.f32.mxu0 0.0
  %355 = vmatmul.mubr.f32.gmra.mrb[0].mxu0 %v255
  %v356 = vpop.f32.mrb[0].mxu0
  %v357 = vadd.f32 %v233, %v356
  %v358 = vpop.f32.mrb[0].mxu0
  %359 = vmatprep.mubr.f32.mxu0 0.0
  %360 = vmatmul.mubr.f32.gmra.mrb[0].mxu0 %v258
  %v361 = vpop.f32.mrb[0].mxu0
  %v362 = vadd.f32 %v233, %v361
  %v363 = vpop.f32.mrb[0].mxu0
  %364 = vdwg.mxu0
  %v365 = vmax.f32 %v327, 0.0
  %v366 = vmax.f32 %v332, 0.0
  %v367 = vmax.f32 %v337, 0.0
  %v368 = vmax.f32 %v342, 0.0
  %v369 = vmax.f32 %v347, 0.0
  %v370 = vmax.f32 %v352, 0.0
  %v371 = vmax.f32 %v357, 0.0
  %v372 = vmax.f32 %v362, 0.0
  %v373 = vld [vmem:[%s0] sm:$0xff]
  %v374 = vld [vmem:[%s0 + $0x8] sm:$0xff]
  %v375 = vld [vmem:[%s0 + $0x10] sm:$0xff]
  %v376 = vld [vmem:[%s0 + $0x18] sm:$0xff]
  %v377 = vld [vmem:[%s0 + $0x20] sm:$0xff]
  %v378 = vld [vmem:[%s0 + $0x28] sm:$0xff]
  %v379 = vld [vmem:[%s0 + $0x30] sm:$0xff]
  %v380 = vld [vmem:[%s0 + $0x38] sm:$0xff]
  %v381 = vld [vmem:[%s0 + $0x40] sm:$0xff]
  %v382 = vld [vmem:[%s0 + $0x48] sm:$0xff]
  %v383 = vld [vmem:[%s0 + $0x50] sm:$0xff]
  %v384 = vld [vmem:[%s0 + $0x58] sm:$0xff]
  %v385 = vld [vmem:[%s0 + $0x60] sm:$0xff]
  %v386 = vld [vmem:[%s0 + $0x68] sm:$0xff]
  %v387 = vld [vmem:[%s0 + $0x70] sm:$0xff]
  %v388 = vld [vmem:[%s0 + $0x78] sm:$0xff]
  %v389 = vld [vmem:[%s0 + $0x80] sm:$0xff]
  %v390 = vld [vmem:[%s0 + $0x88] sm:$0xff]
  %v391 = vld [vmem:[%s0 + $0x90] sm:$0xff]
  %v392 = vld [vmem:[%s0 + $0x98] sm:$0xff]
  %v393 = vld [vmem:[%s0 + $0xa0] sm:$0xff]
  %v394 = vld [vmem:[%s0 + $0xa8] sm:$0xff]
  %v395 = vld [vmem:[%s0 + $0xb0] sm:$0xff]
  %v396 = vld [vmem:[%s0 + $0xb8] sm:$0xff]
  %v397 = vld [vmem:[%s0 + $0xc0] sm:$0xff]
  %v398 = vld [vmem:[%s0 + $0xc8] sm:$0xff]
  %v399 = vld [vmem:[%s0 + $0xd0] sm:$0xff]
  %v400 = vld [vmem:[%s0 + $0xd8] sm:$0xff]
  %v401 = vld [vmem:[%s0 + $0xe0] sm:$0xff]
  %v402 = vld [vmem:[%s0 + $0xe8] sm:$0xff]
  %v403 = vld [vmem:[%s0 + $0xf0] sm:$0xff]
  %v404 = vld [vmem:[%s0 + $0xf8] sm:$0xff]
  %v405 = vld [vmem:[%s7] sm:$0xff]
  %v406 = vld [vmem:[%s7 + $0x8] sm:$0xff]
  %v407 = vld [vmem:[%s7 + $0x10] sm:$0xff]
  %v408 = vld [vmem:[%s7 + $0x18] sm:$0xff]
  %v409 = vld [vmem:[%s7 + $0x20] sm:$0xff]
  %v410 = vld [vmem:[%s7 + $0x28] sm:$0xff]
  %v411 = vld [vmem:[%s7 + $0x30] sm:$0xff]
  %v412 = vld [vmem:[%s7 + $0x38] sm:$0xff]
  %v413 = vld [vmem:[%s7 + $0x40] sm:$0xff]
  %v414 = vld [vmem:[%s7 + $0x48] sm:$0xff]
  %v415 = vld [vmem:[%s7 + $0x50] sm:$0xff]
  %v416 = vld [vmem:[%s7 + $0x58] sm:$0xff]
  %v417 = vld [vmem:[%s7 + $0x60] sm:$0xff]
  %v418 = vld [vmem:[%s7 + $0x68] sm:$0xff]
  %v419 = vld [vmem:[%s7 + $0x70] sm:$0xff]
  %v420 = vld [vmem:[%s7 + $0x78] sm:$0xff]
  %v421 = vld [vmem:[%s7 + $0x80] sm:$0xff]
  %v422 = vld [vmem:[%s7 + $0x88] sm:$0xff]
  %v423 = vld [vmem:[%s7 + $0x90] sm:$0xff]
  %v424 = vld [vmem:[%s7 + $0x98] sm:$0xff]
  %v425 = vld [vmem:[%s7 + $0xa0] sm:$0xff]
  %v426 = vld [vmem:[%s7 + $0xa8] sm:$0xff]
  %v427 = vld [vmem:[%s7 + $0xb0] sm:$0xff]
  %v428 = vld [vmem:[%s7 + $0xb8] sm:$0xff]
  %v429 = vld [vmem:[%s7 + $0xc0] sm:$0xff]
  %v430 = vld [vmem:[%s7 + $0xc8] sm:$0xff]
  %v431 = vld [vmem:[%s7 + $0xd0] sm:$0xff]
  %v432 = vld [vmem:[%s7 + $0xd8] sm:$0xff]
  %v433 = vld [vmem:[%s7 + $0xe0] sm:$0xff]
  %v434 = vld [vmem:[%s7 + $0xe8] sm:$0xff]
  %v435 = vld [vmem:[%s7 + $0xf0] sm:$0xff]
  %v436 = vld [vmem:[%s7 + $0xf8] sm:$0xff]
  %v437 = vld [vmem:[%s7 + $0x100] sm:$0xff]
  %v438 = vld [vmem:[%s7 + $0x108] sm:$0xff]
  %v439 = vld [vmem:[%s7 + $0x110] sm:$0xff]
  %v440 = vld [vmem:[%s7 + $0x118] sm:$0xff]
  %v441 = vld [vmem:[%s7 + $0x120] sm:$0xff]
  %v442 = vld [vmem:[%s7 + $0x128] sm:$0xff]
  %v443 = vld [vmem:[%s7 + $0x130] sm:$0xff]
  %v444 = vld [vmem:[%s7 + $0x138] sm:$0xff]
  %v445 = vld [vmem:[%s7 + $0x140] sm:$0xff]
  %v446 = vld [vmem:[%s7 + $0x148] sm:$0xff]
  %v447 = vld [vmem:[%s7 + $0x150] sm:$0xff]
  %v448 = vld [vmem:[%s7 + $0x158] sm:$0xff]
  %v449 = vld [vmem:[%s7 + $0x160] sm:$0xff]
  %v450 = vld [vmem:[%s7 + $0x168] sm:$0xff]
  %v451 = vld [vmem:[%s7 + $0x170] sm:$0xff]
  %v452 = vld [vmem:[%s7 + $0x178] sm:$0xff]
  %v453 = vld [vmem:[%s7 + $0x180] sm:$0xff]
  %v454 = vld [vmem:[%s7 + $0x188] sm:$0xff]
  %v455 = vld [vmem:[%s7 + $0x190] sm:$0xff]
  %v456 = vld [vmem:[%s7 + $0x198] sm:$0xff]
  %v457 = vld [vmem:[%s7 + $0x1a0] sm:$0xff]
  %v458 = vld [vmem:[%s7 + $0x1a8] sm:$0xff]
  %v459 = vld [vmem:[%s7 + $0x1b0] sm:$0xff]
  %v460 = vld [vmem:[%s7 + $0x1b8] sm:$0xff]
  %v461 = vld [vmem:[%s7 + $0x1c0] sm:$0xff]
  %v462 = vld [vmem:[%s7 + $0x1c8] sm:$0xff]
  %v463 = vld [vmem:[%s7 + $0x1d0] sm:$0xff]
  %v464 = vld [vmem:[%s7 + $0x1d8] sm:$0xff]
  %v465 = vld [vmem:[%s7 + $0x1e0] sm:$0xff]
  %v466 = vld [vmem:[%s7 + $0x1e8] sm:$0xff]
  %v467 = vld [vmem:[%s7 + $0x1f0] sm:$0xff]
  %v468 = vld [vmem:[%s7 + $0x1f8] sm:$0xff]
  %v469 = vld [vmem:[%s8] sm:$0xff]
  %v470 = vld [vmem:[%s8 + $0x8] sm:$0xff]
  %v471 = vld [vmem:[%s8 + $0x10] sm:$0xff]
  %v472 = vld [vmem:[%s8 + $0x18] sm:$0xff]
  %v474 = vsel %vm81, %v211, 0
  %v477 = vsel %vm81, %v212, 0
  %v480 = vsel %vm81, %v213, 0
  %v483 = vsel %vm81, %v214, 0
  %v486 = vsel %vm81, %v215, 0
  %v489 = vsel %vm81, %v216, 0
  %v492 = vsel %vm81, %v217, 0
  %v495 = vsel %vm81, %v218, 0
  %497 = vmatprep.subr.mxu0 0.0
  %498 = vmatpush1.msra.mxu0 %v469
  %499 = vmatprep.subr.mxu0 0.0
  %500 = vmatpush1.msra.mxu0 %v470
  %501 = vmatprep.subr.mxu0 0.0
  %502 = vmatpush1.msra.mxu0 %v471
  %503 = vmatprep.subr.mxu0 0.0
  %504 = vmatpush1.msra.mxu0 %v472
  %505 = vmatprep.subr.mxu0 0.0
  %506 = vmatpush1.msra.mxu0 0.0
  %507 = vmatprep.subr.mxu0 0.0
  %508 = vmatpush1.msra.mxu0 0.0
  %509 = vmatprep.subr.mxu0 0.0
  %510 = vmatpush1.msra.mxu0 0.0
  %511 = vmatprep.subr.mxu0 0.0
  %512 = vmatpush1.msra.mxu0 0.0
  %513 = vmatprep.subr.mxu0 0.0
  %514 = vmatpush1.msra.mxu0 0.0
  %515 = vmatprep.subr.mxu0 0.0
  %516 = vmatpush1.msra.mxu0 0.0
  %517 = vmatprep.subr.mxu0 0.0
  %518 = vmatpush1.msra.mxu0 0.0
  %519 = vmatprep.subr.mxu0 0.0
  %520 = vmatpush1.msra.mxu0 0.0
  %521 = vmatprep.subr.mxu0 0.0
  %522 = vmatpush1.msra.mxu0 0.0
  %523 = vmatprep.subr.mxu0 0.0
  %524 = vmatpush1.msra.mxu0 0.0
  %525 = vmatprep.subr.mxu0 0.0
  %526 = vmatpush1.msra.mxu0 0.0
  %527 = vmatprep.subr.mxu0 0.0
  %528 = vmatpush1.msra.mxu0 0.0
  %529 = vmatprep.subr.mxu0 0.0
  %530 = vmatpush1.msra.mxu0 0.0
  %531 = vmatprep.subr.mxu0 0.0
  %532 = vmatpush1.msra.mxu0 0.0
  %533 = vmatprep.subr.mxu0 0.0
  %534 = vmatpush1.msra.mxu0 0.0
  %535 = vmatprep.subr.mxu0 0.0
  %536 = vmatpush1.msra.mxu0 0.0
  %537 = vmatprep.subr.mxu0 0.0
  %538 = vmatpush1.msra.mxu0 0.0
  %539 = vmatprep.subr.mxu0 0.0
  %540 = vmatpush1.msra.mxu0 0.0
  %541 = vmatprep.subr.mxu0 0.0
  %542 = vmatpush1.msra.mxu0 0.0
  %543 = vmatprep.subr.mxu0 0.0
  %544 = vmatpush1.msra.mxu0 0.0
  %545 = vmatprep.subr.mxu0 0.0
  %546 = vmatpush1.msra.mxu0 0.0
  %547 = vmatprep.subr.mxu0 0.0
  %548 = vmatpush1.msra.mxu0 0.0
  %549 = vmatprep.subr.mxu0 0.0
  %550 = vmatpush1.msra.mxu0 0.0
  %551 = vmatprep.subr.mxu0 0.0
  %552 = vmatpush1.msra.mxu0 0.0
  %553 = vmatprep.subr.mxu0 0.0
  %554 = vmatpush1.msra.mxu0 0.0
  %555 = vmatprep.subr.mxu0 0.0
  %556 = vmatpush1.msra.mxu0 0.0
  %557 = vmatprep.subr.mxu0 0.0
  %558 = vmatpush1.msra.mxu0 0.0
  %559 = vmatprep.subr.mxu0 0.0
  %560 = vmatpush1.msra.mxu0 0.0
  %561 = vmatprep.mubr.f32.mxu0 0.0
  %562 = vmatmul.mubr.f32.gmra.mrb[0].mxu0 %v474
  %v563 = vpop.f32.mrb[0].mxu0
  %v564 = vadd.f32 0.0, %v563
  %v565 = vpop.f32.mrb[0].mxu0
  %566 = vmatprep.mubr.f32.mxu0 0.0
  %567 = vmatmul.mubr.f32.gmra.mrb[0].mxu0 %v477
  %v568 = vpop.f32.mrb[0].mxu0
  %v569 = vadd.f32 0.0, %v568
  %v570 = vpop.f32.mrb[0].mxu0
  %571 = vmatprep.mubr.f32.mxu0 0.0
  %572 = vmatmul.mubr.f32.gmra.mrb[0].mxu0 %v480
  %v573 = vpop.f32.mrb[0].mxu0
  %v574 = vadd.f32 0.0, %v573
  %v575 = vpop.f32.mrb[0].mxu0
  %576 = vmatprep.mubr.f32.mxu0 0.0
  %577 = vmatmul.mubr.f32.gmra.mrb[0].mxu0 %v483
  %v578 = vpop.f32.mrb[0].mxu0
  %v579 = vadd.f32 0.0, %v578
  %v580 = vpop.f32.mrb[0].mxu0
  %581 = vmatprep.mubr.f32.mxu0 0.0
  %582 = vmatmul.mubr.f32.gmra.mrb[0].mxu0 %v486
  %v583 = vpop.f32.mrb[0].mxu0
  %v584 = vadd.f32 0.0, %v583
  %v585 = vpop.f32.mrb[0].mxu0
  %586 = vmatprep.mubr.f32.mxu0 0.0
  %587 = vmatmul.mubr.f32.gmra.mrb[0].mxu0 %v489
  %v588 = vpop.f32.mrb[0].mxu0
  %v589 = vadd.f32 0.0, %v588
  %v590 = vpop.f32.mrb[0].mxu0
  %591 = vmatprep.mubr.f32.mxu0 0.0
  %592 = vmatmul.mubr.f32.gmra.mrb[0].mxu0 %v492
  %v593 = vpop.f32.mrb[0].mxu0
  %v594 = vadd.f32 0.0, %v593
  %v595 = vpop.f32.mrb[0].mxu0
  %596 = vmatprep.mubr.f32.mxu0 0.0
  %597 = vmatmul.mubr.f32.gmra.mrb[0].mxu0 %v495
  %v598 = vpop.f32.mrb[0].mxu0
  %v599 = vadd.f32 0.0, %v598
  %v600 = vpop.f32.mrb[0].mxu0
  %601 = vdwg.mxu0
  %602 = vmatprep.subr.mxu0 0.0
  %603 = vmatpush1.msra.mxu0 %v405
  %604 = vmatprep.subr.mxu0 0.0
  %605 = vmatpush1.msra.mxu0 %v406
  %606 = vmatprep.subr.mxu0 0.0
  %607 = vmatpush1.msra.mxu0 %v407
  %608 = vmatprep.subr.mxu0 0.0
  %609 = vmatpush1.msra.mxu0 %v408
  %610 = vmatprep.subr.mxu0 0.0
  %611 = vmatpush1.msra.mxu0 %v409
  %612 = vmatprep.subr.mxu0 0.0
  %613 = vmatpush1.msra.mxu0 %v410
  %614 = vmatprep.subr.mxu0 0.0
  %615 = vmatpush1.msra.mxu0 %v411
  %616 = vmatprep.subr.mxu0 0.0
  %617 = vmatpush1.msra.mxu0 %v412
  %618 = vmatprep.subr.mxu0 0.0
  %619 = vmatpush1.msra.mxu0 %v413
  %620 = vmatprep.subr.mxu0 0.0
  %621 = vmatpush1.msra.mxu0 %v414
  %622 = vmatprep.subr.mxu0 0.0
  %623 = vmatpush1.msra.mxu0 %v415
  %624 = vmatprep.subr.mxu0 0.0
  %625 = vmatpush1.msra.mxu0 %v416
  %626 = vmatprep.subr.mxu0 0.0
  %627 = vmatpush1.msra.mxu0 %v417
  %628 = vmatprep.subr.mxu0 0.0
  %629 = vmatpush1.msra.mxu0 %v418
  %630 = vmatprep.subr.mxu0 0.0
  %631 = vmatpush1.msra.mxu0 %v419
  %632 = vmatprep.subr.mxu0 0.0
  %633 = vmatpush1.msra.mxu0 %v420
  %634 = vmatprep.subr.mxu0 0.0
  %635 = vmatpush1.msra.mxu0 %v421
  %636 = vmatprep.subr.mxu0 0.0
  %637 = vmatpush1.msra.mxu0 %v422
  %638 = vmatprep.subr.mxu0 0.0
  %639 = vmatpush1.msra.mxu0 %v423
  %640 = vmatprep.subr.mxu0 0.0
  %641 = vmatpush1.msra.mxu0 %v424
  %642 = vmatprep.subr.mxu0 0.0
  %643 = vmatpush1.msra.mxu0 %v425
  %644 = vmatprep.subr.mxu0 0.0
  %645 = vmatpush1.msra.mxu0 %v426
  %646 = vmatprep.subr.mxu0 0.0
  %647 = vmatpush1.msra.mxu0 %v427
  %648 = vmatprep.subr.mxu0 0.0
  %649 = vmatpush1.msra.mxu0 %v428
  %650 = vmatprep.subr.mxu0 0.0
  %651 = vmatpush1.msra.mxu0 %v429
  %652 = vmatprep.subr.mxu0 0.0
  %653 = vmatpush1.msra.mxu0 %v430
  %654 = vmatprep.subr.mxu0 0.0
  %655 = vmatpush1.msra.mxu0 %v431
  %656 = vmatprep.subr.mxu0 0.0
  %657 = vmatpush1.msra.mxu0 %v432
  %658 = vmatprep.subr.mxu0 0.0
  %659 = vmatpush1.msra.mxu0 %v433
  %660 = vmatprep.subr.mxu0 0.0
  %661 = vmatpush1.msra.mxu0 %v434
  %662 = vmatprep.subr.mxu0 0.0
  %663 = vmatpush1.msra.mxu0 %v435
  %664 = vmatprep.subr.mxu0 0.0
  %665 = vmatpush1.msra.mxu0 %v436
  %666 = vmatprep.mubr.f32.mxu0 %v374
  %667 = vmatmul.mubr.f32.gmra.mrb[0].mxu0 %v373
  %v668 = vpop.f32.mrb[0].mxu0
  %v669 = vadd.f32 %v564, %v668
  %v670 = vpop.f32.mrb[0].mxu0
  %671 = vmatprep.mubr.f32.mxu0 %v378
  %672 = vmatmul.mubr.f32.gmra.mrb[0].mxu0 %v377
  %v673 = vpop.f32.mrb[0].mxu0
  %v674 = vadd.f32 %v569, %v673
  %v675 = vpop.f32.mrb[0].mxu0
  %676 = vmatprep.mubr.f32.mxu0 %v382
  %677 = vmatmul.mubr.f32.gmra.mrb[0].mxu0 %v381
  %v678 = vpop.f32.mrb[0].mxu0
  %v679 = vadd.f32 %v574, %v678
  %v680 = vpop.f32.mrb[0].mxu0
  %681 = vmatprep.mubr.f32.mxu0 %v386
  %682 = vmatmul.mubr.f32.gmra.mrb[0].mxu0 %v385
  %v683 = vpop.f32.mrb[0].mxu0
  %v684 = vadd.f32 %v579, %v683
  %v685 = vpop.f32.mrb[0].mxu0
  %686 = vmatprep.mubr.f32.mxu0 %v390
  %687 = vmatmul.mubr.f32.gmra.mrb[0].mxu0 %v389
  %v688 = vpop.f32.mrb[0].mxu0
  %v689 = vadd.f32 %v584, %v688
  %v690 = vpop.f32.mrb[0].mxu0
  %691 = vmatprep.mubr.f32.mxu0 %v394
  %692 = vmatmul.mubr.f32.gmra.mrb[0].mxu0 %v393
  %v693 = vpop.f32.mrb[0].mxu0
  %v694 = vadd.f32 %v589, %v693
  %v695 = vpop.f32.mrb[0].mxu0
  %696 = vmatprep.mubr.f32.mxu0 %v398
  %697 = vmatmul.mubr.f32.gmra.mrb[0].mxu0 %v397
  %v698 = vpop.f32.mrb[0].mxu0
  %v699 = vadd.f32 %v594, %v698
  %v700 = vpop.f32.mrb[0].mxu0
  %701 = vmatprep.mubr.f32.mxu0 %v402
  %702 = vmatmul.mubr.f32.gmra.mrb[0].mxu0 %v401
  %v703 = vpop.f32.mrb[0].mxu0
  %v704 = vadd.f32 %v599, %v703
  %v705 = vpop.f32.mrb[0].mxu0
  %706 = vdwg.mxu0
  %707 = vmatprep.subr.mxu0 0.0
  %708 = vmatpush1.msra.mxu0 %v437
  %709 = vmatprep.subr.mxu0 0.0
  %710 = vmatpush1.msra.mxu0 %v438
  %711 = vmatprep.subr.mxu0 0.0
  %712 = vmatpush1.msra.mxu0 %v439
  %713 = vmatprep.subr.mxu0 0.0
  %714 = vmatpush1.msra.mxu0 %v440
  %715 = vmatprep.subr.mxu0 0.0
  %716 = vmatpush1.msra.mxu0 %v441
  %717 = vmatprep.subr.mxu0 0.0
  %718 = vmatpush1.msra.mxu0 %v442
  %719 = vmatprep.subr.mxu0 0.0
  %720 = vmatpush1.msra.mxu0 %v443
  %721 = vmatprep.subr.mxu0 0.0
  %722 = vmatpush1.msra.mxu0 %v444
  %723 = vmatprep.subr.mxu0 0.0
  %724 = vmatpush1.msra.mxu0 %v445
  %725 = vmatprep.subr.mxu0 0.0
  %726 = vmatpush1.msra.mxu0 %v446
  %727 = vmatprep.subr.mxu0 0.0
  %728 = vmatpush1.msra.mxu0 %v447
  %729 = vmatprep.subr.mxu0 0.0
  %730 = vmatpush1.msra.mxu0 %v448
  %731 = vmatprep.subr.mxu0 0.0
  %732 = vmatpush1.msra.mxu0 %v449
  %733 = vmatprep.subr.mxu0 0.0
  %734 = vmatpush1.msra.mxu0 %v450
  %735 = vmatprep.subr.mxu0 0.0
  %736 = vmatpush1.msra.mxu0 %v451
  %737 = vmatprep.subr.mxu0 0.0
  %738 = vmatpush1.msra.mxu0 %v452
  %739 = vmatprep.subr.mxu0 0.0
  %740 = vmatpush1.msra.mxu0 %v453
  %741 = vmatprep.subr.mxu0 0.0
  %742 = vmatpush1.msra.mxu0 %v454
  %743 = vmatprep.subr.mxu0 0.0
  %744 = vmatpush1.msra.mxu0 %v455
  %745 = vmatprep.subr.mxu0 0.0
  %746 = vmatpush1.msra.mxu0 %v456
  %747 = vmatprep.subr.mxu0 0.0
  %748 = vmatpush1.msra.mxu0 %v457
  %749 = vmatprep.subr.mxu0 0.0
  %750 = vmatpush1.msra.mxu0 %v458
  %751 = vmatprep.subr.mxu0 0.0
  %752 = vmatpush1.msra.mxu0 %v459
  %753 = vmatprep.subr.mxu0 0.0
  %754 = vmatpush1.msra.mxu0 %v460
  %755 = vmatprep.subr.mxu0 0.0
  %756 = vmatpush1.msra.mxu0 %v461
  %757 = vmatprep.subr.mxu0 0.0
  %758 = vmatpush1.msra.mxu0 %v462
  %759 = vmatprep.subr.mxu0 0.0
  %760 = vmatpush1.msra.mxu0 %v463
  %761 = vmatprep.subr.mxu0 0.0
  %762 = vmatpush1.msra.mxu0 %v464
  %763 = vmatprep.subr.mxu0 0.0
  %764 = vmatpush1.msra.mxu0 %v465
  %765 = vmatprep.subr.mxu0 0.0
  %766 = vmatpush1.msra.mxu0 %v466
  %767 = vmatprep.subr.mxu0 0.0
  %768 = vmatpush1.msra.mxu0 %v467
  %769 = vmatprep.subr.mxu0 0.0
  %770 = vmatpush1.msra.mxu0 %v468
  %771 = vmatprep.mubr.f32.mxu0 %v376
  %772 = vmatmul.mubr.f32.gmra.mrb[0].mxu0 %v375
  %v773 = vpop.f32.mrb[0].mxu0
  %v774 = vadd.f32 %v669, %v773
  %v775 = vpop.f32.mrb[0].mxu0
  %776 = vmatprep.mubr.f32.mxu0 %v380
  %777 = vmatmul.mubr.f32.gmra.mrb[0].mxu0 %v379
  %v778 = vpop.f32.mrb[0].mxu0
  %v779 = vadd.f32 %v674, %v778
  %v780 = vpop.f32.mrb[0].mxu0
  %781 = vmatprep.mubr.f32.mxu0 %v384
  %782 = vmatmul.mubr.f32.gmra.mrb[0].mxu0 %v383
  %v783 = vpop.f32.mrb[0].mxu0
  %v784 = vadd.f32 %v679, %v783
  %v785 = vpop.f32.mrb[0].mxu0
  %786 = vmatprep.mubr.f32.mxu0 %v388
  %787 = vmatmul.mubr.f32.gmra.mrb[0].mxu0 %v387
  %v788 = vpop.f32.mrb[0].mxu0
  %v789 = vadd.f32 %v684, %v788
  %v790 = vpop.f32.mrb[0].mxu0
  %791 = vmatprep.mubr.f32.mxu0 %v392
  %792 = vmatmul.mubr.f32.gmra.mrb[0].mxu0 %v391
  %v793 = vpop.f32.mrb[0].mxu0
  %v794 = vadd.f32 %v689, %v793
  %v795 = vpop.f32.mrb[0].mxu0
  %796 = vmatprep.mubr.f32.mxu0 %v396
  %797 = vmatmul.mubr.f32.gmra.mrb[0].mxu0 %v395
  %v798 = vpop.f32.mrb[0].mxu0
  %v799 = vadd.f32 %v694, %v798
  %v800 = vpop.f32.mrb[0].mxu0
  %801 = vmatprep.mubr.f32.mxu0 %v400
  %802 = vmatmul.mubr.f32.gmra.mrb[0].mxu0 %v399
  %v803 = vpop.f32.mrb[0].mxu0
  %v804 = vadd.f32 %v699, %v803
  %v805 = vpop.f32.mrb[0].mxu0
  %806 = vmatprep.mubr.f32.mxu0 %v404
  %807 = vmatmul.mubr.f32.gmra.mrb[0].mxu0 %v403
  %v808 = vpop.f32.mrb[0].mxu0
  %v809 = vadd.f32 %v704, %v808
  %v810 = vpop.f32.mrb[0].mxu0
  %811 = vdwg.mxu0
  %v812 = vld [vmem:[%s9] sm:$0xff]
  %v813 = vld [vmem:[%s9 + $0x8] sm:$0xff]
  %vm814 = vcmask 130048
  %v816 = vsel %vm814, %v365, 0
  %v819 = vsel %vm814, %v366, 0
  %v822 = vsel %vm814, %v367, 0
  %v825 = vsel %vm814, %v368, 0
  %v828 = vsel %vm814, %v369, 0
  %v831 = vsel %vm814, %v370, 0
  %v834 = vsel %vm814, %v371, 0
  %v837 = vsel %vm814, %v372, 0
  %839 = vmatprep.subr.mxu0 0.0
  %840 = vmatpush1.msra.mxu0 %v812
  %841 = vmatprep.subr.mxu0 0.0
  %842 = vmatpush1.msra.mxu0 %v813
  %843 = vmatprep.subr.mxu0 0.0
  %844 = vmatpush1.msra.mxu0 0.0
  %845 = vmatprep.subr.mxu0 0.0
  %846 = vmatpush1.msra.mxu0 0.0
  %847 = vmatprep.subr.mxu0 0.0
  %848 = vmatpush1.msra.mxu0 0.0
  %849 = vmatprep.subr.mxu0 0.0
  %850 = vmatpush1.msra.mxu0 0.0
  %851 = vmatprep.subr.mxu0 0.0
  %852 = vmatpush1.msra.mxu0 0.0
  %853 = vmatprep.subr.mxu0 0.0
  %854 = vmatpush1.msra.mxu0 0.0
  %855 = vmatprep.subr.mxu0 0.0
  %856 = vmatpush1.msra.mxu0 0.0
  %857 = vmatprep.subr.mxu0 0.0
  %858 = vmatpush1.msra.mxu0 0.0
  %859 = vmatprep.subr.mxu0 0.0
  %860 = vmatpush1.msra.mxu0 0.0
  %861 = vmatprep.subr.mxu0 0.0
  %862 = vmatpush1.msra.mxu0 0.0
  %863 = vmatprep.subr.mxu0 0.0
  %864 = vmatpush1.msra.mxu0 0.0
  %865 = vmatprep.subr.mxu0 0.0
  %866 = vmatpush1.msra.mxu0 0.0
  %867 = vmatprep.subr.mxu0 0.0
  %868 = vmatpush1.msra.mxu0 0.0
  %869 = vmatprep.subr.mxu0 0.0
  %870 = vmatpush1.msra.mxu0 0.0
  %871 = vmatprep.subr.mxu0 0.0
  %872 = vmatpush1.msra.mxu0 0.0
  %873 = vmatprep.subr.mxu0 0.0
  %874 = vmatpush1.msra.mxu0 0.0
  %875 = vmatprep.subr.mxu0 0.0
  %876 = vmatpush1.msra.mxu0 0.0
  %877 = vmatprep.subr.mxu0 0.0
  %878 = vmatpush1.msra.mxu0 0.0
  %879 = vmatprep.subr.mxu0 0.0
  %880 = vmatpush1.msra.mxu0 0.0
  %881 = vmatprep.subr.mxu0 0.0
  %882 = vmatpush1.msra.mxu0 0.0
  %883 = vmatprep.subr.mxu0 0.0
  %884 = vmatpush1.msra.mxu0 0.0
  %885 = vmatprep.subr.mxu0 0.0
  %886 = vmatpush1.msra.mxu0 0.0
  %887 = vmatprep.subr.mxu0 0.0
  %888 = vmatpush1.msra.mxu0 0.0
  %889 = vmatprep.subr.mxu0 0.0
  %890 = vmatpush1.msra.mxu0 0.0
  %891 = vmatprep.subr.mxu0 0.0
  %892 = vmatpush1.msra.mxu0 0.0
  %893 = vmatprep.subr.mxu0 0.0
  %894 = vmatpush1.msra.mxu0 0.0
  %895 = vmatprep.subr.mxu0 0.0
  %896 = vmatpush1.msra.mxu0 0.0
  %897 = vmatprep.subr.mxu0 0.0
  %898 = vmatpush1.msra.mxu0 0.0
  %899 = vmatprep.subr.mxu0 0.0
  %900 = vmatpush1.msra.mxu0 0.0
  %901 = vmatprep.subr.mxu0 0.0
  %902 = vmatpush1.msra.mxu0 0.0
  %903 = vmatprep.mubr.f32.mxu0 0.0
  %904 = vmatmul.mubr.f32.gmra.mrb[0].mxu0 %v816
  %v905 = vpop.f32.mrb[0].mxu0
  %v906 = vadd.f32 0.0, %v905
  %v907 = vpop.f32.mrb[0].mxu0
  %908 = vmatprep.mubr.f32.mxu0 0.0
  %909 = vmatmul.mubr.f32.gmra.mrb[0].mxu0 %v819
  %v910 = vpop.f32.mrb[0].mxu0
  %v911 = vadd.f32 0.0, %v910
  %v912 = vpop.f32.mrb[0].mxu0
  %913 = vmatprep.mubr.f32.mxu0 0.0
  %914 = vmatmul.mubr.f32.gmra.mrb[0].mxu0 %v822
  %v915 = vpop.f32.mrb[0].mxu0
  %v916 = vadd.f32 0.0, %v915
  %v917 = vpop.f32.mrb[0].mxu0
  %918 = vmatprep.mubr.f32.mxu0 0.0
  %919 = vmatmul.mubr.f32.gmra.mrb[0].mxu0 %v825
  %v920 = vpop.f32.mrb[0].mxu0
  %v921 = vadd.f32 0.0, %v920
  %v922 = vpop.f32.mrb[0].mxu0
  %923 = vmatprep.mubr.f32.mxu0 0.0
  %924 = vmatmul.mubr.f32.gmra.mrb[0].mxu0 %v828
  %v925 = vpop.f32.mrb[0].mxu0
  %v926 = vadd.f32 0.0, %v925
  %v927 = vpop.f32.mrb[0].mxu0
  %928 = vmatprep.mubr.f32.mxu0 0.0
  %929 = vmatmul.mubr.f32.gmra.mrb[0].mxu0 %v831
  %v930 = vpop.f32.mrb[0].mxu0
  %v931 = vadd.f32 0.0, %v930
  %v932 = vpop.f32.mrb[0].mxu0
  %933 = vmatprep.mubr.f32.mxu0 0.0
  %934 = vmatmul.mubr.f32.gmra.mrb[0].mxu0 %v834
  %v935 = vpop.f32.mrb[0].mxu0
  %v936 = vadd.f32 0.0, %v935
  %v937 = vpop.f32.mrb[0].mxu0
  %938 = vmatprep.mubr.f32.mxu0 0.0
  %939 = vmatmul.mubr.f32.gmra.mrb[0].mxu0 %v837
  %v940 = vpop.f32.mrb[0].mxu0
  %v941 = vadd.f32 0.0, %v940
  %v942 = vpop.f32.mrb[0].mxu0
  %943 = vdwg.mxu0
  %v944 = vadd.f32 %v774, %v906
  %v945 = vadd.f32 %v779, %v911
  %v946 = vadd.f32 %v784, %v916
  %v947 = vadd.f32 %v789, %v921
  %v948 = vadd.f32 %v794, %v926
  %v949 = vadd.f32 %v799, %v931
  %v950 = vadd.f32 %v804, %v936
  %v951 = vadd.f32 %v809, %v941
  %v952 = vld [vmem:[%s10] sm:$0x1]
  %v954 = vlaneseq
  %v955 = vshrl.u32 %v954, 7
  %v956 = vsub.s32 0, %v955
  %v957 = vrot.slane %v952, %v956
  %v959 = vadd.f32 %v944, %v957
  %v960 = vadd.f32 %v945, %v957
  %v961 = vadd.f32 %v946, %v957
  %v962 = vadd.f32 %v947, %v957
  %v963 = vadd.f32 %v948, %v957
  %v964 = vadd.f32 %v949, %v957
  %v965 = vadd.f32 %v950, %v957
  %v966 = vadd.f32 %v951, %v957
  %v967 = vmax.f32 %v959, 0.0
  %v968 = vmax.f32 %v960, 0.0
  %v969 = vmax.f32 %v961, 0.0
  %v970 = vmax.f32 %v962, 0.0
  %v971 = vmax.f32 %v963, 0.0
  %v972 = vmax.f32 %v964, 0.0
  %v973 = vmax.f32 %v965, 0.0
  %v974 = vmax.f32 %v966, 0.0
  %v975 = vld [vmem:[%s11] sm:$0xff]
  %v976 = vld [vmem:[%s11 + $0x8] sm:$0xff]
  %v977 = vld [vmem:[%s11 + $0x10] sm:$0xff]
  %v978 = vld [vmem:[%s11 + $0x18] sm:$0xff]
  %v979 = vld [vmem:[%s13] sm:$0x1]
  %v981 = vlaneseq
  %v982 = vshrl.u32 %v981, 7
  %v983 = vsub.s32 0, %v982
  %v984 = vrot.slane %v979, %v983
  %v987 = vsel %vm81, %v967, 0
  %v990 = vsel %vm81, %v968, 0
  %v993 = vsel %vm81, %v969, 0
  %v996 = vsel %vm81, %v970, 0
  %v999 = vsel %vm81, %v971, 0
  %v1002 = vsel %vm81, %v972, 0
  %v1005 = vsel %vm81, %v973, 0
  %v1008 = vsel %vm81, %v974, 0
  %1010 = vmatprep.subr.mxu0 0.0
  %1011 = vmatpush1.msra.mxu0 %v975
  %1012 = vmatprep.subr.mxu0 0.0
  %1013 = vmatpush1.msra.mxu0 %v976
  %1014 = vmatprep.subr.mxu0 0.0
  %1015 = vmatpush1.msra.mxu0 %v977
  %1016 = vmatprep.subr.mxu0 0.0
  %1017 = vmatpush1.msra.mxu0 %v978
  %1018 = vmatprep.subr.mxu0 0.0
  %1019 = vmatpush1.msra.mxu0 0.0
  %1020 = vmatprep.subr.mxu0 0.0
  %1021 = vmatpush1.msra.mxu0 0.0
  %1022 = vmatprep.subr.mxu0 0.0
  %1023 = vmatpush1.msra.mxu0 0.0
  %1024 = vmatprep.subr.mxu0 0.0
  %1025 = vmatpush1.msra.mxu0 0.0
  %1026 = vmatprep.subr.mxu0 0.0
  %1027 = vmatpush1.msra.mxu0 0.0
  %1028 = vmatprep.subr.mxu0 0.0
  %1029 = vmatpush1.msra.mxu0 0.0
  %1030 = vmatprep.subr.mxu0 0.0
  %1031 = vmatpush1.msra.mxu0 0.0
  %1032 = vmatprep.subr.mxu0 0.0
  %1033 = vmatpush1.msra.mxu0 0.0
  %1034 = vmatprep.subr.mxu0 0.0
  %1035 = vmatpush1.msra.mxu0 0.0
  %1036 = vmatprep.subr.mxu0 0.0
  %1037 = vmatpush1.msra.mxu0 0.0
  %1038 = vmatprep.subr.mxu0 0.0
  %1039 = vmatpush1.msra.mxu0 0.0
  %1040 = vmatprep.subr.mxu0 0.0
  %1041 = vmatpush1.msra.mxu0 0.0
  %1042 = vmatprep.subr.mxu0 0.0
  %1043 = vmatpush1.msra.mxu0 0.0
  %1044 = vmatprep.subr.mxu0 0.0
  %1045 = vmatpush1.msra.mxu0 0.0
  %1046 = vmatprep.subr.mxu0 0.0
  %1047 = vmatpush1.msra.mxu0 0.0
  %1048 = vmatprep.subr.mxu0 0.0
  %1049 = vmatpush1.msra.mxu0 0.0
  %1050 = vmatprep.subr.mxu0 0.0
  %1051 = vmatpush1.msra.mxu0 0.0
  %1052 = vmatprep.subr.mxu0 0.0
  %1053 = vmatpush1.msra.mxu0 0.0
  %1054 = vmatprep.subr.mxu0 0.0
  %1055 = vmatpush1.msra.mxu0 0.0
  %1056 = vmatprep.subr.mxu0 0.0
  %1057 = vmatpush1.msra.mxu0 0.0
  %1058 = vmatprep.subr.mxu0 0.0
  %1059 = vmatpush1.msra.mxu0 0.0
  %1060 = vmatprep.subr.mxu0 0.0
  %1061 = vmatpush1.msra.mxu0 0.0
  %1062 = vmatprep.subr.mxu0 0.0
  %1063 = vmatpush1.msra.mxu0 0.0
  %1064 = vmatprep.subr.mxu0 0.0
  %1065 = vmatpush1.msra.mxu0 0.0
  %1066 = vmatprep.subr.mxu0 0.0
  %1067 = vmatpush1.msra.mxu0 0.0
  %1068 = vmatprep.subr.mxu0 0.0
  %1069 = vmatpush1.msra.mxu0 0.0
  %1070 = vmatprep.subr.mxu0 0.0
  %1071 = vmatpush1.msra.mxu0 0.0
  %1072 = vmatprep.subr.mxu0 0.0
  %1073 = vmatpush1.msra.mxu0 0.0
  %1074 = vmatprep.mubr.f32.mxu0 0.0
  %1075 = vmatmul.mubr.f32.gmra.mrb[0].mxu0 %v987
  %v1076 = vpop.f32.mrb[0].mxu0
  %v1077 = vadd.f32 %v984, %v1076
  %v1078 = vpop.f32.mrb[0].mxu0
  %1079 = vmatprep.mubr.f32.mxu0 0.0
  %1080 = vmatmul.mubr.f32.gmra.mrb[0].mxu0 %v990
  %v1081 = vpop.f32.mrb[0].mxu0
  %v1082 = vadd.f32 %v984, %v1081
  %v1083 = vpop.f32.mrb[0].mxu0
  %1084 = vmatprep.mubr.f32.mxu0 0.0
  %1085 = vmatmul.mubr.f32.gmra.mrb[0].mxu0 %v993
  %v1086 = vpop.f32.mrb[0].mxu0
  %v1087 = vadd.f32 %v984, %v1086
  %v1088 = vpop.f32.mrb[0].mxu0
  %1089 = vmatprep.mubr.f32.mxu0 0.0
  %1090 = vmatmul.mubr.f32.gmra.mrb[0].mxu0 %v996
  %v1091 = vpop.f32.mrb[0].mxu0
  %v1092 = vadd.f32 %v984, %v1091
  %v1093 = vpop.f32.mrb[0].mxu0
  %1094 = vmatprep.mubr.f32.mxu0 0.0
  %1095 = vmatmul.mubr.f32.gmra.mrb[0].mxu0 %v999
  %v1096 = vpop.f32.mrb[0].mxu0
  %v1097 = vadd.f32 %v984, %v1096
  %v1098 = vpop.f32.mrb[0].mxu0
  %1099 = vmatprep.mubr.f32.mxu0 0.0
  %1100 = vmatmul.mubr.f32.gmra.mrb[0].mxu0 %v1002
  %v1101 = vpop.f32.mrb[0].mxu0
  %v1102 = vadd.f32 %v984, %v1101
  %v1103 = vpop.f32.mrb[0].mxu0
  %1104 = vmatprep.mubr.f32.mxu0 0.0
  %1105 = vmatmul.mubr.f32.gmra.mrb[0].mxu0 %v1005
  %v1106 = vpop.f32.mrb[0].mxu0
  %v1107 = vadd.f32 %v984, %v1106
  %v1108 = vpop.f32.mrb[0].mxu0
  %1109 = vmatprep.mubr.f32.mxu0 0.0
  %1110 = vmatmul.mubr.f32.gmra.mrb[0].mxu0 %v1008
  %v1111 = vpop.f32.mrb[0].mxu0
  %v1112 = vadd.f32 %v984, %v1111
  %v1113 = vpop.f32.mrb[0].mxu0
  %1114 = vdwg.mxu0
  %v1115 = vld [vmem:[%s12] sm:$0xff]
  %v1116 = vld [vmem:[%s12 + $0x8] sm:$0xff]
  %v1117 = vld [vmem:[%s12 + $0x10] sm:$0xff]
  %v1118 = vld [vmem:[%s12 + $0x18] sm:$0xff]
  %v1120 = vsel %vm81, 0.0, 0
  %1122 = vmatprep.subr.mxu0 0.0
  %1123 = vmatpush1.msra.mxu0 %v1115
  %1124 = vmatprep.subr.mxu0 0.0
  %1125 = vmatpush1.msra.mxu0 %v1116
  %1126 = vmatprep.subr.mxu0 0.0
  %1127 = vmatpush1.msra.mxu0 %v1117
  %1128 = vmatprep.subr.mxu0 0.0
  %1129 = vmatpush1.msra.mxu0 %v1118
  %1130 = vmatprep.subr.mxu0 0.0
  %1131 = vmatpush1.msra.mxu0 0.0
  %1132 = vmatprep.subr.mxu0 0.0
  %1133 = vmatpush1.msra.mxu0 0.0
  %1134 = vmatprep.subr.mxu0 0.0
  %1135 = vmatpush1.msra.mxu0 0.0
  %1136 = vmatprep.subr.mxu0 0.0
  %1137 = vmatpush1.msra.mxu0 0.0
  %1138 = vmatprep.subr.mxu0 0.0
  %1139 = vmatpush1.msra.mxu0 0.0
  %1140 = vmatprep.subr.mxu0 0.0
  %1141 = vmatpush1.msra.mxu0 0.0
  %1142 = vmatprep.subr.mxu0 0.0
  %1143 = vmatpush1.msra.mxu0 0.0
  %1144 = vmatprep.subr.mxu0 0.0
  %1145 = vmatpush1.msra.mxu0 0.0
  %1146 = vmatprep.subr.mxu0 0.0
  %1147 = vmatpush1.msra.mxu0 0.0
  %1148 = vmatprep.subr.mxu0 0.0
  %1149 = vmatpush1.msra.mxu0 0.0
  %1150 = vmatprep.subr.mxu0 0.0
  %1151 = vmatpush1.msra.mxu0 0.0
  %1152 = vmatprep.subr.mxu0 0.0
  %1153 = vmatpush1.msra.mxu0 0.0
  %1154 = vmatprep.subr.mxu0 0.0
  %1155 = vmatpush1.msra.mxu0 0.0
  %1156 = vmatprep.subr.mxu0 0.0
  %1157 = vmatpush1.msra.mxu0 0.0
  %1158 = vmatprep.subr.mxu0 0.0
  %1159 = vmatpush1.msra.mxu0 0.0
  %1160 = vmatprep.subr.mxu0 0.0
  %1161 = vmatpush1.msra.mxu0 0.0
  %1162 = vmatprep.subr.mxu0 0.0
  %1163 = vmatpush1.msra.mxu0 0.0
  %1164 = vmatprep.subr.mxu0 0.0
  %1165 = vmatpush1.msra.mxu0 0.0
  %1166 = vmatprep.subr.mxu0 0.0
  %1167 = vmatpush1.msra.mxu0 0.0
  %1168 = vmatprep.subr.mxu0 0.0
  %1169 = vmatpush1.msra.mxu0 0.0
  %1170 = vmatprep.subr.mxu0 0.0
  %1171 = vmatpush1.msra.mxu0 0.0
  %1172 = vmatprep.subr.mxu0 0.0
  %1173 = vmatpush1.msra.mxu0 0.0
  %1174 = vmatprep.subr.mxu0 0.0
  %1175 = vmatpush1.msra.mxu0 0.0
  %1176 = vmatprep.subr.mxu0 0.0
  %1177 = vmatpush1.msra.mxu0 0.0
  %1178 = vmatprep.subr.mxu0 0.0
  %1179 = vmatpush1.msra.mxu0 0.0
  %1180 = vmatprep.subr.mxu0 0.0
  %1181 = vmatpush1.msra.mxu0 0.0
  %1182 = vmatprep.subr.mxu0 0.0
  %1183 = vmatpush1.msra.mxu0 0.0
  %1184 = vmatprep.subr.mxu0 0.0
  %1185 = vmatpush1.msra.mxu0 0.0
  %1186 = vmatprep.mubr.f32.mxu0 0.0
  %1187 = vmatmul.mubr.f32.gmra.mrb[0].mxu0 %v1120
  %v1188 = vpop.f32.mrb[0].mxu0
  %v1189 = vadd.f32 0.0, %v1188
  %v1190 = vpop.f32.mrb[0].mxu0
  %1191 = vdwg.mxu0
  %v1192 = vadd.f32 %v1077, %v1189
  %v1193 = vxor.u32 %v1192, 2147483648
  %v1194 = vmul.f32 %v1193, 1.442695
  %v1195 = vpow.pop %v1194
  %v1196 = vadd.f32 %v1195, 1.0
  %v1197 = vrcp.pop %v1196
  %v1198 = vmul.f32 1.0, %v1197
  %v1199 = vmul.f32 %v1198, 2.0
  %v1200 = vsub.f32 %v1199, 1.0
  %v1201 = vmul.f32 %v1198, 0.0
  %1203 = vrot.lane.b32.xlu0 %v1200, 64
  %v1204 = vpop.permute.xlu0 %1203
  %v1206 = vmul.f32 %v1198, %v1204
  %1208 = vrot.lane.b32.xlu0 %v1206, 32
  %v1209 = vpop.permute.xlu0 %1208
  %v1211 = vadd.f32 %v1201, %v1209
  %v1212 = vtanh.pop %v1211
  %1214 = vrot.lane.b32.xlu0 %v1212, 64
  %v1215 = vpop.permute.xlu0 %1214
  %v1217 = vmul.f32 %v1198, %v1215
  %1219 = vrot.lane.b32.xlu0 %v1217, 32
  %v1220 = vpop.permute.xlu0 %1219
  %v1221 = vsel %vm81, %v1220, 0
  %1223 = vmatprep.subr.mxu0 0.0
  %1224 = vmatpush1.msra.mxu0 %v1115
  %1225 = vmatprep.subr.mxu0 0.0
  %1226 = vmatpush1.msra.mxu0 %v1116
  %1227 = vmatprep.subr.mxu0 0.0
  %1228 = vmatpush1.msra.mxu0 %v1117
  %1229 = vmatprep.subr.mxu0 0.0
  %1230 = vmatpush1.msra.mxu0 %v1118
  %1231 = vmatprep.subr.mxu0 0.0
  %1232 = vmatpush1.msra.mxu0 0.0
  %1233 = vmatprep.subr.mxu0 0.0
  %1234 = vmatpush1.msra.mxu0 0.0
  %1235 = vmatprep.subr.mxu0 0.0
  %1236 = vmatpush1.msra.mxu0 0.0
  %1237 = vmatprep.subr.mxu0 0.0
  %1238 = vmatpush1.msra.mxu0 0.0
  %1239 = vmatprep.subr.mxu0 0.0
  %1240 = vmatpush1.msra.mxu0 0.0
  %1241 = vmatprep.subr.mxu0 0.0
  %1242 = vmatpush1.msra.mxu0 0.0
  %1243 = vmatprep.subr.mxu0 0.0
  %1244 = vmatpush1.msra.mxu0 0.0
  %1245 = vmatprep.subr.mxu0 0.0
  %1246 = vmatpush1.msra.mxu0 0.0
  %1247 = vmatprep.subr.mxu0 0.0
  %1248 = vmatpush1.msra.mxu0 0.0
  %1249 = vmatprep.subr.mxu0 0.0
  %1250 = vmatpush1.msra.mxu0 0.0
  %1251 = vmatprep.subr.mxu0 0.0
  %1252 = vmatpush1.msra.mxu0 0.0
  %1253 = vmatprep.subr.mxu0 0.0
  %1254 = vmatpush1.msra.mxu0 0.0
  %1255 = vmatprep.subr.mxu0 0.0
  %1256 = vmatpush1.msra.mxu0 0.0
  %1257 = vmatprep.subr.mxu0 0.0
  %1258 = vmatpush1.msra.mxu0 0.0
  %1259 = vmatprep.subr.mxu0 0.0
  %1260 = vmatpush1.msra.mxu0 0.0
  %1261 = vmatprep.subr.mxu0 0.0
  %1262 = vmatpush1.msra.mxu0 0.0
  %1263 = vmatprep.subr.mxu0 0.0
  %1264 = vmatpush1.msra.mxu0 0.0
  %1265 = vmatprep.subr.mxu0 0.0
  %1266 = vmatpush1.msra.mxu0 0.0
  %1267 = vmatprep.subr.mxu0 0.0
  %1268 = vmatpush1.msra.mxu0 0.0
  %1269 = vmatprep.subr.mxu0 0.0
  %1270 = vmatpush1.msra.mxu0 0.0
  %1271 = vmatprep.subr.mxu0 0.0
  %1272 = vmatpush1.msra.mxu0 0.0
  %1273 = vmatprep.subr.mxu0 0.0
  %1274 = vmatpush1.msra.mxu0 0.0
  %1275 = vmatprep.subr.mxu0 0.0
  %1276 = vmatpush1.msra.mxu0 0.0
  %1277 = vmatprep.subr.mxu0 0.0
  %1278 = vmatpush1.msra.mxu0 0.0
  %1279 = vmatprep.subr.mxu0 0.0
  %1280 = vmatpush1.msra.mxu0 0.0
  %1281 = vmatprep.subr.mxu0 0.0
  %1282 = vmatpush1.msra.mxu0 0.0
  %1283 = vmatprep.subr.mxu0 0.0
  %1284 = vmatpush1.msra.mxu0 0.0
  %1285 = vmatprep.subr.mxu0 0.0
  %1286 = vmatpush1.msra.mxu0 0.0
  %1287 = vmatprep.mubr.f32.mxu0 0.0
  %1288 = vmatmul.mubr.f32.gmra.mrb[0].mxu0 %v1221
  %v1289 = vpop.f32.mrb[0].mxu0
  %v1290 = vadd.f32 0.0, %v1289
  %v1291 = vpop.f32.mrb[0].mxu0
  %1292 = vdwg.mxu0
  %v1293 = vadd.f32 %v1082, %v1290
  %v1294 = vxor.u32 %v1293, 2147483648
  %v1295 = vmul.f32 %v1294, 1.442695
  %v1296 = vpow.pop %v1295
  %v1297 = vadd.f32 %v1296, 1.0
  %v1298 = vrcp.pop %v1297
  %v1299 = vmul.f32 1.0, %v1298
  %v1300 = vmul.f32 %v1299, 2.0
  %v1301 = vsub.f32 %v1300, 1.0
  %v1302 = vmul.f32 %v1299, %v1211
  %1304 = vrot.lane.b32.xlu0 %v1301, 64
  %v1305 = vpop.permute.xlu0 %1304
  %v1307 = vmul.f32 %v1299, %v1305
  %1309 = vrot.lane.b32.xlu0 %v1307, 32
  %v1310 = vpop.permute.xlu0 %1309
  %v1312 = vadd.f32 %v1302, %v1310
  %v1313 = vtanh.pop %v1312
  %1315 = vrot.lane.b32.xlu0 %v1313, 64
  %v1316 = vpop.permute.xlu0 %1315
  %v1318 = vmul.f32 %v1299, %v1316
  %1320 = vrot.lane.b32.xlu0 %v1318, 32
  %v1321 = vpop.permute.xlu0 %1320
  %v1322 = vsel %vm81, %v1321, 0
  %1324 = vmatprep.subr.mxu0 0.0
  %1325 = vmatpush1.msra.mxu0 %v1115
  %1326 = vmatprep.subr.mxu0 0.0
  %1327 = vmatpush1.msra.mxu0 %v1116
  %1328 = vmatprep.subr.mxu0 0.0
  %1329 = vmatpush1.msra.mxu0 %v1117
  %1330 = vmatprep.subr.mxu0 0.0
  %1331 = vmatpush1.msra.mxu0 %v1118
  %1332 = vmatprep.subr.mxu0 0.0
  %1333 = vmatpush1.msra.mxu0 0.0
  %1334 = vmatprep.subr.mxu0 0.0
  %1335 = vmatpush1.msra.mxu0 0.0
  %1336 = vmatprep.subr.mxu0 0.0
  %1337 = vmatpush1.msra.mxu0 0.0
  %1338 = vmatprep.subr.mxu0 0.0
  %1339 = vmatpush1.msra.mxu0 0.0
  %1340 = vmatprep.subr.mxu0 0.0
  %1341 = vmatpush1.msra.mxu0 0.0
  %1342 = vmatprep.subr.mxu0 0.0
  %1343 = vmatpush1.msra.mxu0 0.0
  %1344 = vmatprep.subr.mxu0 0.0
  %1345 = vmatpush1.msra.mxu0 0.0
  %1346 = vmatprep.subr.mxu0 0.0
  %1347 = vmatpush1.msra.mxu0 0.0
  %1348 = vmatprep.subr.mxu0 0.0
  %1349 = vmatpush1.msra.mxu0 0.0
  %1350 = vmatprep.subr.mxu0 0.0
  %1351 = vmatpush1.msra.mxu0 0.0
  %1352 = vmatprep.subr.mxu0 0.0
  %1353 = vmatpush1.msra.mxu0 0.0
  %1354 = vmatprep.subr.mxu0 0.0
  %1355 = vmatpush1.msra.mxu0 0.0
  %1356 = vmatprep.subr.mxu0 0.0
  %1357 = vmatpush1.msra.mxu0 0.0
  %1358 = vmatprep.subr.mxu0 0.0
  %1359 = vmatpush1.msra.mxu0 0.0
  %1360 = vmatprep.subr.mxu0 0.0
  %1361 = vmatpush1.msra.mxu0 0.0
  %1362 = vmatprep.subr.mxu0 0.0
  %1363 = vmatpush1.msra.mxu0 0.0
  %1364 = vmatprep.subr.mxu0 0.0
  %1365 = vmatpush1.msra.mxu0 0.0
  %1366 = vmatprep.subr.mxu0 0.0
  %1367 = vmatpush1.msra.mxu0 0.0
  %1368 = vmatprep.subr.mxu0 0.0
  %1369 = vmatpush1.msra.mxu0 0.0
  %1370 = vmatprep.subr.mxu0 0.0
  %1371 = vmatpush1.msra.mxu0 0.0
  %1372 = vmatprep.subr.mxu0 0.0
  %1373 = vmatpush1.msra.mxu0 0.0
  %1374 = vmatprep.subr.mxu0 0.0
  %1375 = vmatpush1.msra.mxu0 0.0
  %1376 = vmatprep.subr.mxu0 0.0
  %1377 = vmatpush1.msra.mxu0 0.0
  %1378 = vmatprep.subr.mxu0 0.0
  %1379 = vmatpush1.msra.mxu0 0.0
  %1380 = vmatprep.subr.mxu0 0.0
  %1381 = vmatpush1.msra.mxu0 0.0
  %1382 = vmatprep.subr.mxu0 0.0
  %1383 = vmatpush1.msra.mxu0 0.0
  %1384 = vmatprep.subr.mxu0 0.0
  %1385 = vmatpush1.msra.mxu0 0.0
  %1386 = vmatprep.subr.mxu0 0.0
  %1387 = vmatpush1.msra.mxu0 0.0
  %1388 = vmatprep.mubr.f32.mxu0 0.0
  %1389 = vmatmul.mubr.f32.gmra.mrb[0].mxu0 %v1322
  %v1390 = vpop.f32.mrb[0].mxu0
  %v1391 = vadd.f32 0.0, %v1390
  %v1392 = vpop.f32.mrb[0].mxu0
  %1393 = vdwg.mxu0
  %v1394 = vadd.f32 %v1087, %v1391
  %v1395 = vxor.u32 %v1394, 2147483648
  %v1396 = vmul.f32 %v1395, 1.442695
  %v1397 = vpow.pop %v1396
  %v1398 = vadd.f32 %v1397, 1.0
  %v1399 = vrcp.pop %v1398
  %v1400 = vmul.f32 1.0, %v1399
  %v1401 = vmul.f32 %v1400, 2.0
  %v1402 = vsub.f32 %v1401, 1.0
  %v1403 = vmul.f32 %v1400, %v1312
  %1405 = vrot.lane.b32.xlu0 %v1402, 64
  %v1406 = vpop.permute.xlu0 %1405
  %v1408 = vmul.f32 %v1400, %v1406
  %1410 = vrot.lane.b32.xlu0 %v1408, 32
  %v1411 = vpop.permute.xlu0 %1410
  %v1413 = vadd.f32 %v1403, %v1411
  %v1414 = vtanh.pop %v1413
  %1416 = vrot.lane.b32.xlu0 %v1414, 64
  %v1417 = vpop.permute.xlu0 %1416
  %v1419 = vmul.f32 %v1400, %v1417
  %1421 = vrot.lane.b32.xlu0 %v1419, 32
  %v1422 = vpop.permute.xlu0 %1421
  %v1423 = vsel %vm81, %v1422, 0
  %1425 = vmatprep.subr.mxu0 0.0
  %1426 = vmatpush1.msra.mxu0 %v1115
  %1427 = vmatprep.subr.mxu0 0.0
  %1428 = vmatpush1.msra.mxu0 %v1116
  %1429 = vmatprep.subr.mxu0 0.0
  %1430 = vmatpush1.msra.mxu0 %v1117
  %1431 = vmatprep.subr.mxu0 0.0
  %1432 = vmatpush1.msra.mxu0 %v1118
  %1433 = vmatprep.subr.mxu0 0.0
  %1434 = vmatpush1.msra.mxu0 0.0
  %1435 = vmatprep.subr.mxu0 0.0
  %1436 = vmatpush1.msra.mxu0 0.0
  %1437 = vmatprep.subr.mxu0 0.0
  %1438 = vmatpush1.msra.mxu0 0.0
  %1439 = vmatprep.subr.mxu0 0.0
  %1440 = vmatpush1.msra.mxu0 0.0
  %1441 = vmatprep.subr.mxu0 0.0
  %1442 = vmatpush1.msra.mxu0 0.0
  %1443 = vmatprep.subr.mxu0 0.0
  %1444 = vmatpush1.msra.mxu0 0.0
  %1445 = vmatprep.subr.mxu0 0.0
  %1446 = vmatpush1.msra.mxu0 0.0
  %1447 = vmatprep.subr.mxu0 0.0
  %1448 = vmatpush1.msra.mxu0 0.0
  %1449 = vmatprep.subr.mxu0 0.0
  %1450 = vmatpush1.msra.mxu0 0.0
  %1451 = vmatprep.subr.mxu0 0.0
  %1452 = vmatpush1.msra.mxu0 0.0
  %1453 = vmatprep.subr.mxu0 0.0
  %1454 = vmatpush1.msra.mxu0 0.0
  %1455 = vmatprep.subr.mxu0 0.0
  %1456 = vmatpush1.msra.mxu0 0.0
  %1457 = vmatprep.subr.mxu0 0.0
  %1458 = vmatpush1.msra.mxu0 0.0
  %1459 = vmatprep.subr.mxu0 0.0
  %1460 = vmatpush1.msra.mxu0 0.0
  %1461 = vmatprep.subr.mxu0 0.0
  %1462 = vmatpush1.msra.mxu0 0.0
  %1463 = vmatprep.subr.mxu0 0.0
  %1464 = vmatpush1.msra.mxu0 0.0
  %1465 = vmatprep.subr.mxu0 0.0
  %1466 = vmatpush1.msra.mxu0 0.0
  %1467 = vmatprep.subr.mxu0 0.0
  %1468 = vmatpush1.msra.mxu0 0.0
  %1469 = vmatprep.subr.mxu0 0.0
  %1470 = vmatpush1.msra.mxu0 0.0
  %1471 = vmatprep.subr.mxu0 0.0
  %1472 = vmatpush1.msra.mxu0 0.0
  %1473 = vmatprep.subr.mxu0 0.0
  %1474 = vmatpush1.msra.mxu0 0.0
  %1475 = vmatprep.subr.mxu0 0.0
  %1476 = vmatpush1.msra.mxu0 0.0
  %1477 = vmatprep.subr.mxu0 0.0
  %1478 = vmatpush1.msra.mxu0 0.0
  %1479 = vmatprep.subr.mxu0 0.0
  %1480 = vmatpush1.msra.mxu0 0.0
  %1481 = vmatprep.subr.mxu0 0.0
  %1482 = vmatpush1.msra.mxu0 0.0
  %1483 = vmatprep.subr.mxu0 0.0
  %1484 = vmatpush1.msra.mxu0 0.0
  %1485 = vmatprep.subr.mxu0 0.0
  %1486 = vmatpush1.msra.mxu0 0.0
  %1487 = vmatprep.subr.mxu0 0.0
  %1488 = vmatpush1.msra.mxu0 0.0
  %1489 = vmatprep.mubr.f32.mxu0 0.0
  %1490 = vmatmul.mubr.f32.gmra.mrb[0].mxu0 %v1423
  %v1491 = vpop.f32.mrb[0].mxu0
  %v1492 = vadd.f32 0.0, %v1491
  %v1493 = vpop.f32.mrb[0].mxu0
  %1494 = vdwg.mxu0
  %v1495 = vadd.f32 %v1092, %v1492
  %v1496 = vxor.u32 %v1495, 2147483648
  %v1497 = vmul.f32 %v1496, 1.442695
  %v1498 = vpow.pop %v1497
  %v1499 = vadd.f32 %v1498, 1.0
  %v1500 = vrcp.pop %v1499
  %v1501 = vmul.f32 1.0, %v1500
  %v1502 = vmul.f32 %v1501, 2.0
  %v1503 = vsub.f32 %v1502, 1.0
  %v1504 = vmul.f32 %v1501, %v1413
  %1506 = vrot.lane.b32.xlu0 %v1503, 64
  %v1507 = vpop.permute.xlu0 %1506
  %v1509 = vmul.f32 %v1501, %v1507
  %1511 = vrot.lane.b32.xlu0 %v1509, 32
  %v1512 = vpop.permute.xlu0 %1511
  %v1514 = vadd.f32 %v1504, %v1512
  %v1515 = vtanh.pop %v1514
  %1517 = vrot.lane.b32.xlu0 %v1515, 64
  %v1518 = vpop.permute.xlu0 %1517
  %v1520 = vmul.f32 %v1501, %v1518
  %1522 = vrot.lane.b32.xlu0 %v1520, 32
  %v1523 = vpop.permute.xlu0 %1522
  %v1524 = vsel %vm81, %v1523, 0
  %1526 = vmatprep.subr.mxu0 0.0
  %1527 = vmatpush1.msra.mxu0 %v1115
  %1528 = vmatprep.subr.mxu0 0.0
  %1529 = vmatpush1.msra.mxu0 %v1116
  %1530 = vmatprep.subr.mxu0 0.0
  %1531 = vmatpush1.msra.mxu0 %v1117
  %1532 = vmatprep.subr.mxu0 0.0
  %1533 = vmatpush1.msra.mxu0 %v1118
  %1534 = vmatprep.subr.mxu0 0.0
  %1535 = vmatpush1.msra.mxu0 0.0
  %1536 = vmatprep.subr.mxu0 0.0
  %1537 = vmatpush1.msra.mxu0 0.0
  %1538 = vmatprep.subr.mxu0 0.0
  %1539 = vmatpush1.msra.mxu0 0.0
  %1540 = vmatprep.subr.mxu0 0.0
  %1541 = vmatpush1.msra.mxu0 0.0
  %1542 = vmatprep.subr.mxu0 0.0
  %1543 = vmatpush1.msra.mxu0 0.0
  %1544 = vmatprep.subr.mxu0 0.0
  %1545 = vmatpush1.msra.mxu0 0.0
  %1546 = vmatprep.subr.mxu0 0.0
  %1547 = vmatpush1.msra.mxu0 0.0
  %1548 = vmatprep.subr.mxu0 0.0
  %1549 = vmatpush1.msra.mxu0 0.0
  %1550 = vmatprep.subr.mxu0 0.0
  %1551 = vmatpush1.msra.mxu0 0.0
  %1552 = vmatprep.subr.mxu0 0.0
  %1553 = vmatpush1.msra.mxu0 0.0
  %1554 = vmatprep.subr.mxu0 0.0
  %1555 = vmatpush1.msra.mxu0 0.0
  %1556 = vmatprep.subr.mxu0 0.0
  %1557 = vmatpush1.msra.mxu0 0.0
  %1558 = vmatprep.subr.mxu0 0.0
  %1559 = vmatpush1.msra.mxu0 0.0
  %1560 = vmatprep.subr.mxu0 0.0
  %1561 = vmatpush1.msra.mxu0 0.0
  %1562 = vmatprep.subr.mxu0 0.0
  %1563 = vmatpush1.msra.mxu0 0.0
  %1564 = vmatprep.subr.mxu0 0.0
  %1565 = vmatpush1.msra.mxu0 0.0
  %1566 = vmatprep.subr.mxu0 0.0
  %1567 = vmatpush1.msra.mxu0 0.0
  %1568 = vmatprep.subr.mxu0 0.0
  %1569 = vmatpush1.msra.mxu0 0.0
  %1570 = vmatprep.subr.mxu0 0.0
  %1571 = vmatpush1.msra.mxu0 0.0
  %1572 = vmatprep.subr.mxu0 0.0
  %1573 = vmatpush1.msra.mxu0 0.0
  %1574 = vmatprep.subr.mxu0 0.0
  %1575 = vmatpush1.msra.mxu0 0.0
  %1576 = vmatprep.subr.mxu0 0.0
  %1577 = vmatpush1.msra.mxu0 0.0
  %1578 = vmatprep.subr.mxu0 0.0
  %1579 = vmatpush1.msra.mxu0 0.0
  %1580 = vmatprep.subr.mxu0 0.0
  %1581 = vmatpush1.msra.mxu0 0.0
  %1582 = vmatprep.subr.mxu0 0.0
  %1583 = vmatpush1.msra.mxu0 0.0
  %1584 = vmatprep.subr.mxu0 0.0
  %1585 = vmatpush1.msra.mxu0 0.0
  %1586 = vmatprep.subr.mxu0 0.0
  %1587 = vmatpush1.msra.mxu0 0.0
  %1588 = vmatprep.subr.mxu0 0.0
  %1589 = vmatpush1.msra.mxu0 0.0
  %1590 = vmatprep.mubr.f32.mxu0 0.0
  %1591 = vmatmul.mubr.f32.gmra.mrb[0].mxu0 %v1524
  %v1592 = vpop.f32.mrb[0].mxu0
  %v1593 = vadd.f32 0.0, %v1592
  %v1594 = vpop.f32.mrb[0].mxu0
  %1595 = vdwg.mxu0
  %v1596 = vadd.f32 %v1097, %v1593
  %v1597 = vxor.u32 %v1596, 2147483648
  %v1598 = vmul.f32 %v1597, 1.442695
  %v1599 = vpow.pop %v1598
  %v1600 = vadd.f32 %v1599, 1.0
  %v1601 = vrcp.pop %v1600
  %v1602 = vmul.f32 1.0, %v1601
  %v1603 = vmul.f32 %v1602, 2.0
  %v1604 = vsub.f32 %v1603, 1.0
  %v1605 = vmul.f32 %v1602, %v1514
  %1607 = vrot.lane.b32.xlu0 %v1604, 64
  %v1608 = vpop.permute.xlu0 %1607
  %v1610 = vmul.f32 %v1602, %v1608
  %1612 = vrot.lane.b32.xlu0 %v1610, 32
  %v1613 = vpop.permute.xlu0 %1612
  %v1615 = vadd.f32 %v1605, %v1613
  %v1616 = vtanh.pop %v1615
  %1618 = vrot.lane.b32.xlu0 %v1616, 64
  %v1619 = vpop.permute.xlu0 %1618
  %v1621 = vmul.f32 %v1602, %v1619
  %1623 = vrot.lane.b32.xlu0 %v1621, 32
  %v1624 = vpop.permute.xlu0 %1623
  %v1625 = vsel %vm81, %v1624, 0
  %1627 = vmatprep.subr.mxu0 0.0
  %1628 = vmatpush1.msra.mxu0 %v1115
  %1629 = vmatprep.subr.mxu0 0.0
  %1630 = vmatpush1.msra.mxu0 %v1116
  %1631 = vmatprep.subr.mxu0 0.0
  %1632 = vmatpush1.msra.mxu0 %v1117
  %1633 = vmatprep.subr.mxu0 0.0
  %1634 = vmatpush1.msra.mxu0 %v1118
  %1635 = vmatprep.subr.mxu0 0.0
  %1636 = vmatpush1.msra.mxu0 0.0
  %1637 = vmatprep.subr.mxu0 0.0
  %1638 = vmatpush1.msra.mxu0 0.0
  %1639 = vmatprep.subr.mxu0 0.0
  %1640 = vmatpush1.msra.mxu0 0.0
  %1641 = vmatprep.subr.mxu0 0.0
  %1642 = vmatpush1.msra.mxu0 0.0
  %1643 = vmatprep.subr.mxu0 0.0
  %1644 = vmatpush1.msra.mxu0 0.0
  %1645 = vmatprep.subr.mxu0 0.0
  %1646 = vmatpush1.msra.mxu0 0.0
  %1647 = vmatprep.subr.mxu0 0.0
  %1648 = vmatpush1.msra.mxu0 0.0
  %1649 = vmatprep.subr.mxu0 0.0
  %1650 = vmatpush1.msra.mxu0 0.0
  %1651 = vmatprep.subr.mxu0 0.0
  %1652 = vmatpush1.msra.mxu0 0.0
  %1653 = vmatprep.subr.mxu0 0.0
  %1654 = vmatpush1.msra.mxu0 0.0
  %1655 = vmatprep.subr.mxu0 0.0
  %1656 = vmatpush1.msra.mxu0 0.0
  %1657 = vmatprep.subr.mxu0 0.0
  %1658 = vmatpush1.msra.mxu0 0.0
  %1659 = vmatprep.subr.mxu0 0.0
  %1660 = vmatpush1.msra.mxu0 0.0
  %1661 = vmatprep.subr.mxu0 0.0
  %1662 = vmatpush1.msra.mxu0 0.0
  %1663 = vmatprep.subr.mxu0 0.0
  %1664 = vmatpush1.msra.mxu0 0.0
  %1665 = vmatprep.subr.mxu0 0.0
  %1666 = vmatpush1.msra.mxu0 0.0
  %1667 = vmatprep.subr.mxu0 0.0
  %1668 = vmatpush1.msra.mxu0 0.0
  %1669 = vmatprep.subr.mxu0 0.0
  %1670 = vmatpush1.msra.mxu0 0.0
  %1671 = vmatprep.subr.mxu0 0.0
  %1672 = vmatpush1.msra.mxu0 0.0
  %1673 = vmatprep.subr.mxu0 0.0
  %1674 = vmatpush1.msra.mxu0 0.0
  %1675 = vmatprep.subr.mxu0 0.0
  %1676 = vmatpush1.msra.mxu0 0.0
  %1677 = vmatprep.subr.mxu0 0.0
  %1678 = vmatpush1.msra.mxu0 0.0
  %1679 = vmatprep.subr.mxu0 0.0
  %1680 = vmatpush1.msra.mxu0 0.0
  %1681 = vmatprep.subr.mxu0 0.0
  %1682 = vmatpush1.msra.mxu0 0.0
  %1683 = vmatprep.subr.mxu0 0.0
  %1684 = vmatpush1.msra.mxu0 0.0
  %1685 = vmatprep.subr.mxu0 0.0
  %1686 = vmatpush1.msra.mxu0 0.0
  %1687 = vmatprep.subr.mxu0 0.0
  %1688 = vmatpush1.msra.mxu0 0.0
  %1689 = vmatprep.subr.mxu0 0.0
  %1690 = vmatpush1.msra.mxu0 0.0
  %1691 = vmatprep.mubr.f32.mxu0 0.0
  %1692 = vmatmul.mubr.f32.gmra.mrb[0].mxu0 %v1625
  %v1693 = vpop.f32.mrb[0].mxu0
  %v1694 = vadd.f32 0.0, %v1693
  %v1695 = vpop.f32.mrb[0].mxu0
  %1696 = vdwg.mxu0
  %v1697 = vadd.f32 %v1102, %v1694
  %v1698 = vxor.u32 %v1697, 2147483648
  %v1699 = vmul.f32 %v1698, 1.442695
  %v1700 = vpow.pop %v1699
  %v1701 = vadd.f32 %v1700, 1.0
  %v1702 = vrcp.pop %v1701
  %v1703 = vmul.f32 1.0, %v1702
  %v1704 = vmul.f32 %v1703, 2.0
  %v1705 = vsub.f32 %v1704, 1.0
  %v1706 = vmul.f32 %v1703, %v1615
  %1708 = vrot.lane.b32.xlu0 %v1705, 64
  %v1709 = vpop.permute.xlu0 %1708
  %v1711 = vmul.f32 %v1703, %v1709
  %1713 = vrot.lane.b32.xlu0 %v1711, 32
  %v1714 = vpop.permute.xlu0 %1713
  %v1716 = vadd.f32 %v1706, %v1714
  %v1717 = vtanh.pop %v1716
  %1719 = vrot.lane.b32.xlu0 %v1717, 64
  %v1720 = vpop.permute.xlu0 %1719
  %v1722 = vmul.f32 %v1703, %v1720
  %1724 = vrot.lane.b32.xlu0 %v1722, 32
  %v1725 = vpop.permute.xlu0 %1724
  %v1726 = vsel %vm81, %v1725, 0
  %1728 = vmatprep.subr.mxu0 0.0
  %1729 = vmatpush1.msra.mxu0 %v1115
  %1730 = vmatprep.subr.mxu0 0.0
  %1731 = vmatpush1.msra.mxu0 %v1116
  %1732 = vmatprep.subr.mxu0 0.0
  %1733 = vmatpush1.msra.mxu0 %v1117
  %1734 = vmatprep.subr.mxu0 0.0
  %1735 = vmatpush1.msra.mxu0 %v1118
  %1736 = vmatprep.subr.mxu0 0.0
  %1737 = vmatpush1.msra.mxu0 0.0
  %1738 = vmatprep.subr.mxu0 0.0
  %1739 = vmatpush1.msra.mxu0 0.0
  %1740 = vmatprep.subr.mxu0 0.0
  %1741 = vmatpush1.msra.mxu0 0.0
  %1742 = vmatprep.subr.mxu0 0.0
  %1743 = vmatpush1.msra.mxu0 0.0
  %1744 = vmatprep.subr.mxu0 0.0
  %1745 = vmatpush1.msra.mxu0 0.0
  %1746 = vmatprep.subr.mxu0 0.0
  %1747 = vmatpush1.msra.mxu0 0.0
  %1748 = vmatprep.subr.mxu0 0.0
  %1749 = vmatpush1.msra.mxu0 0.0
  %1750 = vmatprep.subr.mxu0 0.0
  %1751 = vmatpush1.msra.mxu0 0.0
  %1752 = vmatprep.subr.mxu0 0.0
  %1753 = vmatpush1.msra.mxu0 0.0
  %1754 = vmatprep.subr.mxu0 0.0
  %1755 = vmatpush1.msra.mxu0 0.0
  %1756 = vmatprep.subr.mxu0 0.0
  %1757 = vmatpush1.msra.mxu0 0.0
  %1758 = vmatprep.subr.mxu0 0.0
  %1759 = vmatpush1.msra.mxu0 0.0
  %1760 = vmatprep.subr.mxu0 0.0
  %1761 = vmatpush1.msra.mxu0 0.0
  %1762 = vmatprep.subr.mxu0 0.0
  %1763 = vmatpush1.msra.mxu0 0.0
  %1764 = vmatprep.subr.mxu0 0.0
  %1765 = vmatpush1.msra.mxu0 0.0
  %1766 = vmatprep.subr.mxu0 0.0
  %1767 = vmatpush1.msra.mxu0 0.0
  %1768 = vmatprep.subr.mxu0 0.0
  %1769 = vmatpush1.msra.mxu0 0.0
  %1770 = vmatprep.subr.mxu0 0.0
  %1771 = vmatpush1.msra.mxu0 0.0
  %1772 = vmatprep.subr.mxu0 0.0
  %1773 = vmatpush1.msra.mxu0 0.0
  %1774 = vmatprep.subr.mxu0 0.0
  %1775 = vmatpush1.msra.mxu0 0.0
  %1776 = vmatprep.subr.mxu0 0.0
  %1777 = vmatpush1.msra.mxu0 0.0
  %1778 = vmatprep.subr.mxu0 0.0
  %1779 = vmatpush1.msra.mxu0 0.0
  %1780 = vmatprep.subr.mxu0 0.0
  %1781 = vmatpush1.msra.mxu0 0.0
  %1782 = vmatprep.subr.mxu0 0.0
  %1783 = vmatpush1.msra.mxu0 0.0
  %1784 = vmatprep.subr.mxu0 0.0
  %1785 = vmatpush1.msra.mxu0 0.0
  %1786 = vmatprep.subr.mxu0 0.0
  %1787 = vmatpush1.msra.mxu0 0.0
  %1788 = vmatprep.subr.mxu0 0.0
  %1789 = vmatpush1.msra.mxu0 0.0
  %1790 = vmatprep.subr.mxu0 0.0
  %1791 = vmatpush1.msra.mxu0 0.0
  %1792 = vmatprep.mubr.f32.mxu0 0.0
  %1793 = vmatmul.mubr.f32.gmra.mrb[0].mxu0 %v1726
  %v1794 = vpop.f32.mrb[0].mxu0
  %v1795 = vadd.f32 0.0, %v1794
  %v1796 = vpop.f32.mrb[0].mxu0
  %1797 = vdwg.mxu0
  %v1798 = vadd.f32 %v1107, %v1795
  %v1799 = vxor.u32 %v1798, 2147483648
  %v1800 = vmul.f32 %v1799, 1.442695
  %v1801 = vpow.pop %v1800
  %v1802 = vadd.f32 %v1801, 1.0
  %v1803 = vrcp.pop %v1802
  %v1804 = vmul.f32 1.0, %v1803
  %v1805 = vmul.f32 %v1804, 2.0
  %v1806 = vsub.f32 %v1805, 1.0
  %v1807 = vmul.f32 %v1804, %v1716
  %1809 = vrot.lane.b32.xlu0 %v1806, 64
  %v1810 = vpop.permute.xlu0 %1809
  %v1812 = vmul.f32 %v1804, %v1810
  %1814 = vrot.lane.b32.xlu0 %v1812, 32
  %v1815 = vpop.permute.xlu0 %1814
  %v1817 = vadd.f32 %v1807, %v1815
  %v1818 = vtanh.pop %v1817
  %1820 = vrot.lane.b32.xlu0 %v1818, 64
  %v1821 = vpop.permute.xlu0 %1820
  %v1823 = vmul.f32 %v1804, %v1821
  %1825 = vrot.lane.b32.xlu0 %v1823, 32
  %v1826 = vpop.permute.xlu0 %1825
  %v1827 = vsel %vm81, %v1826, 0
  %1829 = vmatprep.subr.mxu0 0.0
  %1830 = vmatpush1.msra.mxu0 %v1115
  %1831 = vmatprep.subr.mxu0 0.0
  %1832 = vmatpush1.msra.mxu0 %v1116
  %1833 = vmatprep.subr.mxu0 0.0
  %1834 = vmatpush1.msra.mxu0 %v1117
  %1835 = vmatprep.subr.mxu0 0.0
  %1836 = vmatpush1.msra.mxu0 %v1118
  %1837 = vmatprep.subr.mxu0 0.0
  %1838 = vmatpush1.msra.mxu0 0.0
  %1839 = vmatprep.subr.mxu0 0.0
  %1840 = vmatpush1.msra.mxu0 0.0
  %1841 = vmatprep.subr.mxu0 0.0
  %1842 = vmatpush1.msra.mxu0 0.0
  %1843 = vmatprep.subr.mxu0 0.0
  %1844 = vmatpush1.msra.mxu0 0.0
  %1845 = vmatprep.subr.mxu0 0.0
  %1846 = vmatpush1.msra.mxu0 0.0
  %1847 = vmatprep.subr.mxu0 0.0
  %1848 = vmatpush1.msra.mxu0 0.0
  %1849 = vmatprep.subr.mxu0 0.0
  %1850 = vmatpush1.msra.mxu0 0.0
  %1851 = vmatprep.subr.mxu0 0.0
  %1852 = vmatpush1.msra.mxu0 0.0
  %1853 = vmatprep.subr.mxu0 0.0
  %1854 = vmatpush1.msra.mxu0 0.0
  %1855 = vmatprep.subr.mxu0 0.0
  %1856 = vmatpush1.msra.mxu0 0.0
  %1857 = vmatprep.subr.mxu0 0.0
  %1858 = vmatpush1.msra.mxu0 0.0
  %1859 = vmatprep.subr.mxu0 0.0
  %1860 = vmatpush1.msra.mxu0 0.0
  %1861 = vmatprep.subr.mxu0 0.0
  %1862 = vmatpush1.msra.mxu0 0.0
  %1863 = vmatprep.subr.mxu0 0.0
  %1864 = vmatpush1.msra.mxu0 0.0
  %1865 = vmatprep.subr.mxu0 0.0
  %1866 = vmatpush1.msra.mxu0 0.0
  %1867 = vmatprep.subr.mxu0 0.0
  %1868 = vmatpush1.msra.mxu0 0.0
  %1869 = vmatprep.subr.mxu0 0.0
  %1870 = vmatpush1.msra.mxu0 0.0
  %1871 = vmatprep.subr.mxu0 0.0
  %1872 = vmatpush1.msra.mxu0 0.0
  %1873 = vmatprep.subr.mxu0 0.0
  %1874 = vmatpush1.msra.mxu0 0.0
  %1875 = vmatprep.subr.mxu0 0.0
  %1876 = vmatpush1.msra.mxu0 0.0
  %1877 = vmatprep.subr.mxu0 0.0
  %1878 = vmatpush1.msra.mxu0 0.0
  %1879 = vmatprep.subr.mxu0 0.0
  %1880 = vmatpush1.msra.mxu0 0.0
  %1881 = vmatprep.subr.mxu0 0.0
  %1882 = vmatpush1.msra.mxu0 0.0
  %1883 = vmatprep.subr.mxu0 0.0
  %1884 = vmatpush1.msra.mxu0 0.0
  %1885 = vmatprep.subr.mxu0 0.0
  %1886 = vmatpush1.msra.mxu0 0.0
  %1887 = vmatprep.subr.mxu0 0.0
  %1888 = vmatpush1.msra.mxu0 0.0
  %1889 = vmatprep.subr.mxu0 0.0
  %1890 = vmatpush1.msra.mxu0 0.0
  %1891 = vmatprep.subr.mxu0 0.0
  %1892 = vmatpush1.msra.mxu0 0.0
  %1893 = vmatprep.mubr.f32.mxu0 0.0
  %1894 = vmatmul.mubr.f32.gmra.mrb[0].mxu0 %v1827
  %v1895 = vpop.f32.mrb[0].mxu0
  %v1896 = vadd.f32 0.0, %v1895
  %v1897 = vpop.f32.mrb[0].mxu0
  %1898 = vdwg.mxu0
  %v1899 = vadd.f32 %v1112, %v1896
  %v1900 = vxor.u32 %v1899, 2147483648
  %v1901 = vmul.f32 %v1900, 1.442695
  %v1902 = vpow.pop %v1901
  %v1903 = vadd.f32 %v1902, 1.0
  %v1904 = vrcp.pop %v1903
  %v1905 = vmul.f32 1.0, %v1904
  %v1906 = vmul.f32 %v1905, 2.0
  %v1907 = vsub.f32 %v1906, 1.0
  %v1908 = vmul.f32 %v1905, %v1817
  %1910 = vrot.lane.b32.xlu0 %v1907, 64
  %v1911 = vpop.permute.xlu0 %1910
  %v1913 = vmul.f32 %v1905, %v1911
  %1915 = vrot.lane.b32.xlu0 %v1913, 32
  %v1916 = vpop.permute.xlu0 %1915
  %v1918 = vadd.f32 %v1908, %v1916
  %v1919 = vtanh.pop %v1918
  %1921 = vrot.lane.b32.xlu0 %v1919, 64
  %v1922 = vpop.permute.xlu0 %1921
  %v1924 = vmul.f32 %v1905, %v1922
  %1926 = vrot.lane.b32.xlu0 %v1924, 32
  %v1927 = vpop.permute.xlu0 %1926
  %1929 = vst.msk [vmem:[%s19] sm:$0xff] %vm81, %v1927
  %1931 = vrot.lane.b32.xlu0 %v1918, 96
  %v1932 = vpop.permute.xlu0 %1931
  %1934 = vst.msk [vmem:[%s20] sm:$0xff] %vm81, %v1932
  %v1935 = vld [vmem:[%s14] sm:$0xff]
  %v1936 = vld [vmem:[%s14 + $0x8] sm:$0xff]
  %v1937 = vld [vmem:[%s14 + $0x10] sm:$0xff]
  %v1938 = vld [vmem:[%s14 + $0x18] sm:$0xff]
  %v1939 = vld [vmem:[%s14 + $0x20] sm:$0xff]
  %v1940 = vld [vmem:[%s14 + $0x28] sm:$0xff]
  %v1941 = vld [vmem:[%s14 + $0x30] sm:$0xff]
  %v1942 = vld [vmem:[%s14 + $0x38] sm:$0xff]
  %v1943 = vld [vmem:[%s15] sm:$0x3]
  %v1945 = vlaneseq
  %v1946 = vshrl.u32 %v1945, 7
  %v1947 = vsub.s32 0, %v1946
  %v1948 = vrot.slane %v1943, %v1947
  %v1949 = vlaneseq
  %v1950 = vshrl.u32 %v1949, 7
  %v1951 = vsub.s32 1, %v1950
  %v1952 = vrot.slane %v1943, %v1951
  %v1955 = vsel %vm81, %v1927, 0
  %1957 = vmatprep.subr.mxu0 %v1936
  %1958 = vmatpush1.msra.mxu0 %v1935
  %1959 = vmatprep.subr.mxu0 %v1938
  %1960 = vmatpush1.msra.mxu0 %v1937
  %1961 = vmatprep.subr.mxu0 %v1940
  %1962 = vmatpush1.msra.mxu0 %v1939
  %1963 = vmatprep.subr.mxu0 %v1942
  %1964 = vmatpush1.msra.mxu0 %v1941
  %1965 = vmatprep.subr.mxu0 0.0
  %1966 = vmatpush1.msra.mxu0 0.0
  %1967 = vmatprep.subr.mxu0 0.0
  %1968 = vmatpush1.msra.mxu0 0.0
  %1969 = vmatprep.subr.mxu0 0.0
  %1970 = vmatpush1.msra.mxu0 0.0
  %1971 = vmatprep.subr.mxu0 0.0
  %1972 = vmatpush1.msra.mxu0 0.0
  %1973 = vmatprep.subr.mxu0 0.0
  %1974 = vmatpush1.msra.mxu0 0.0
  %1975 = vmatprep.subr.mxu0 0.0
  %1976 = vmatpush1.msra.mxu0 0.0
  %1977 = vmatprep.subr.mxu0 0.0
  %1978 = vmatpush1.msra.mxu0 0.0
  %1979 = vmatprep.subr.mxu0 0.0
  %1980 = vmatpush1.msra.mxu0 0.0
  %1981 = vmatprep.subr.mxu0 0.0
  %1982 = vmatpush1.msra.mxu0 0.0
  %1983 = vmatprep.subr.mxu0 0.0
  %1984 = vmatpush1.msra.mxu0 0.0
  %1985 = vmatprep.subr.mxu0 0.0
  %1986 = vmatpush1.msra.mxu0 0.0
  %1987 = vmatprep.subr.mxu0 0.0
  %1988 = vmatpush1.msra.mxu0 0.0
  %1989 = vmatprep.subr.mxu0 0.0
  %1990 = vmatpush1.msra.mxu0 0.0
  %1991 = vmatprep.subr.mxu0 0.0
  %1992 = vmatpush1.msra.mxu0 0.0
  %1993 = vmatprep.subr.mxu0 0.0
  %1994 = vmatpush1.msra.mxu0 0.0
  %1995 = vmatprep.subr.mxu0 0.0
  %1996 = vmatpush1.msra.mxu0 0.0
  %1997 = vmatprep.subr.mxu0 0.0
  %1998 = vmatpush1.msra.mxu0 0.0
  %1999 = vmatprep.subr.mxu0 0.0
  %2000 = vmatpush1.msra.mxu0 0.0
  %2001 = vmatprep.subr.mxu0 0.0
  %2002 = vmatpush1.msra.mxu0 0.0
  %2003 = vmatprep.subr.mxu0 0.0
  %2004 = vmatpush1.msra.mxu0 0.0
  %2005 = vmatprep.subr.mxu0 0.0
  %2006 = vmatpush1.msra.mxu0 0.0
  %2007 = vmatprep.subr.mxu0 0.0
  %2008 = vmatpush1.msra.mxu0 0.0
  %2009 = vmatprep.subr.mxu0 0.0
  %2010 = vmatpush1.msra.mxu0 0.0
  %2011 = vmatprep.subr.mxu0 0.0
  %2012 = vmatpush1.msra.mxu0 0.0
  %2013 = vmatprep.subr.mxu0 0.0
  %2014 = vmatpush1.msra.mxu0 0.0
  %2015 = vmatprep.subr.mxu0 0.0
  %2016 = vmatpush1.msra.mxu0 0.0
  %2017 = vmatprep.subr.mxu0 0.0
  %2018 = vmatpush1.msra.mxu0 0.0
  %2019 = vmatprep.subr.mxu0 0.0
  %2020 = vmatpush1.msra.mxu0 0.0
  %2021 = vmatprep.mubr.f32.mxu0 0.0
  %2022 = vmatmul.mubr.f32.gmra.mrb[0].mxu0 %v1221
  %v2023 = vpop.f32.mrb[0].mxu0
  %v2024 = vadd.f32 %v1948, %v2023
  %v2025 = vpop.f32.mrb[0].mxu0
  %v2026 = vadd.f32 %v1952, %v2025
  %2027 = vmatprep.mubr.f32.mxu0 0.0
  %2028 = vmatmul.mubr.f32.gmra.mrb[0].mxu0 %v1322
  %v2029 = vpop.f32.mrb[0].mxu0
  %v2030 = vadd.f32 %v1948, %v2029
  %v2031 = vpop.f32.mrb[0].mxu0
  %v2032 = vadd.f32 %v1952, %v2031
  %2033 = vmatprep.mubr.f32.mxu0 0.0
  %2034 = vmatmul.mubr.f32.gmra.mrb[0].mxu0 %v1423
  %v2035 = vpop.f32.mrb[0].mxu0
  %v2036 = vadd.f32 %v1948, %v2035
  %v2037 = vpop.f32.mrb[0].mxu0
  %v2038 = vadd.f32 %v1952, %v2037
  %2039 = vmatprep.mubr.f32.mxu0 0.0
  %2040 = vmatmul.mubr.f32.gmra.mrb[0].mxu0 %v1524
  %v2041 = vpop.f32.mrb[0].mxu0
  %v2042 = vadd.f32 %v1948, %v2041
  %v2043 = vpop.f32.mrb[0].mxu0
  %v2044 = vadd.f32 %v1952, %v2043
  %2045 = vmatprep.mubr.f32.mxu0 0.0
  %2046 = vmatmul.mubr.f32.gmra.mrb[0].mxu0 %v1625
  %v2047 = vpop.f32.mrb[0].mxu0
  %v2048 = vadd.f32 %v1948, %v2047
  %v2049 = vpop.f32.mrb[0].mxu0
  %v2050 = vadd.f32 %v1952, %v2049
  %2051 = vmatprep.mubr.f32.mxu0 0.0
  %2052 = vmatmul.mubr.f32.gmra.mrb[0].mxu0 %v1726
  %v2053 = vpop.f32.mrb[0].mxu0
  %v2054 = vadd.f32 %v1948, %v2053
  %v2055 = vpop.f32.mrb[0].mxu0
  %v2056 = vadd.f32 %v1952, %v2055
  %2057 = vmatprep.mubr.f32.mxu0 0.0
  %2058 = vmatmul.mubr.f32.gmra.mrb[0].mxu0 %v1827
  %v2059 = vpop.f32.mrb[0].mxu0
  %v2060 = vadd.f32 %v1948, %v2059
  %v2061 = vpop.f32.mrb[0].mxu0
  %v2062 = vadd.f32 %v1952, %v2061
  %2063 = vmatprep.mubr.f32.mxu0 0.0
  %2064 = vmatmul.mubr.f32.gmra.mrb[0].mxu0 %v1955
  %v2065 = vpop.f32.mrb[0].mxu0
  %v2066 = vadd.f32 %v1948, %v2065
  %v2067 = vpop.f32.mrb[0].mxu0
  %v2068 = vadd.f32 %v1952, %v2067
  %2069 = vdwg.mxu0
  %v2070 = vmax.f32 %v2024, 0.0
  %v2071 = vmax.f32 %v2026, 0.0
  %v2072 = vmax.f32 %v2030, 0.0
  %v2073 = vmax.f32 %v2032, 0.0
  %v2074 = vmax.f32 %v2036, 0.0
  %v2075 = vmax.f32 %v2038, 0.0
  %v2076 = vmax.f32 %v2042, 0.0
  %v2077 = vmax.f32 %v2044, 0.0
  %v2078 = vmax.f32 %v2048, 0.0
  %v2079 = vmax.f32 %v2050, 0.0
  %v2080 = vmax.f32 %v2054, 0.0
  %v2081 = vmax.f32 %v2056, 0.0
  %v2082 = vmax.f32 %v2060, 0.0
  %v2083 = vmax.f32 %v2062, 0.0
  %v2084 = vmax.f32 %v2066, 0.0
  %v2085 = vmax.f32 %v2068, 0.0
  %v2086 = vld [vmem:[%s16] sm:$0xff]
  %v2087 = vld [vmem:[%s16 + $0x8] sm:$0xff]
  %v2088 = vld [vmem:[%s16 + $0x10] sm:$0xff]
  %v2089 = vld [vmem:[%s16 + $0x18] sm:$0xff]
  %v2090 = vld [vmem:[%s16 + $0x20] sm:$0xff]
  %v2091 = vld [vmem:[%s16 + $0x28] sm:$0xff]
  %v2092 = vld [vmem:[%s16 + $0x30] sm:$0xff]
  %v2093 = vld [vmem:[%s16 + $0x38] sm:$0xff]
  %v2094 = vld [vmem:[%s16 + $0x40] sm:$0xff]
  %v2095 = vld [vmem:[%s16 + $0x48] sm:$0xff]
  %v2096 = vld [vmem:[%s16 + $0x50] sm:$0xff]
  %v2097 = vld [vmem:[%s16 + $0x58] sm:$0xff]
  %v2098 = vld [vmem:[%s16 + $0x60] sm:$0xff]
  %v2099 = vld [vmem:[%s16 + $0x68] sm:$0xff]
  %v2100 = vld [vmem:[%s16 + $0x70] sm:$0xff]
  %v2101 = vld [vmem:[%s16 + $0x78] sm:$0xff]
  %v2102 = vld [vmem:[%s16 + $0x80] sm:$0xff]
  %v2103 = vld [vmem:[%s16 + $0x88] sm:$0xff]
  %v2104 = vld [vmem:[%s16 + $0x90] sm:$0xff]
  %v2105 = vld [vmem:[%s16 + $0x98] sm:$0xff]
  %v2106 = vld [vmem:[%s16 + $0xa0] sm:$0xff]
  %v2107 = vld [vmem:[%s16 + $0xa8] sm:$0xff]
  %v2108 = vld [vmem:[%s16 + $0xb0] sm:$0xff]
  %v2109 = vld [vmem:[%s16 + $0xb8] sm:$0xff]
  %v2110 = vld [vmem:[%s16 + $0xc0] sm:$0xff]
  %v2111 = vld [vmem:[%s16 + $0xc8] sm:$0xff]
  %v2112 = vld [vmem:[%s16 + $0xd0] sm:$0xff]
  %v2113 = vld [vmem:[%s16 + $0xd8] sm:$0xff]
  %v2114 = vld [vmem:[%s16 + $0xe0] sm:$0xff]
  %v2115 = vld [vmem:[%s16 + $0xe8] sm:$0xff]
  %v2116 = vld [vmem:[%s16 + $0xf0] sm:$0xff]
  %v2117 = vld [vmem:[%s16 + $0xf8] sm:$0xff]
  %v2118 = vld [vmem:[%s17] sm:$0x1]
  %v2120 = vlaneseq
  %v2121 = vshrl.u32 %v2120, 7
  %v2122 = vsub.s32 0, %v2121
  %v2123 = vrot.slane %v2118, %v2122
  %2125 = vmatprep.subr.mxu0 0.0
  %2126 = vmatpush1.msra.mxu0 %v2086
  %2127 = vmatprep.subr.mxu0 0.0
  %2128 = vmatpush1.msra.mxu0 %v2087
  %2129 = vmatprep.subr.mxu0 0.0
  %2130 = vmatpush1.msra.mxu0 %v2088
  %2131 = vmatprep.subr.mxu0 0.0
  %2132 = vmatpush1.msra.mxu0 %v2089
  %2133 = vmatprep.subr.mxu0 0.0
  %2134 = vmatpush1.msra.mxu0 %v2090
  %2135 = vmatprep.subr.mxu0 0.0
  %2136 = vmatpush1.msra.mxu0 %v2091
  %2137 = vmatprep.subr.mxu0 0.0
  %2138 = vmatpush1.msra.mxu0 %v2092
  %2139 = vmatprep.subr.mxu0 0.0
  %2140 = vmatpush1.msra.mxu0 %v2093
  %2141 = vmatprep.subr.mxu0 0.0
  %2142 = vmatpush1.msra.mxu0 %v2094
  %2143 = vmatprep.subr.mxu0 0.0
  %2144 = vmatpush1.msra.mxu0 %v2095
  %2145 = vmatprep.subr.mxu0 0.0
  %2146 = vmatpush1.msra.mxu0 %v2096
  %2147 = vmatprep.subr.mxu0 0.0
  %2148 = vmatpush1.msra.mxu0 %v2097
  %2149 = vmatprep.subr.mxu0 0.0
  %2150 = vmatpush1.msra.mxu0 %v2098
  %2151 = vmatprep.subr.mxu0 0.0
  %2152 = vmatpush1.msra.mxu0 %v2099
  %2153 = vmatprep.subr.mxu0 0.0
  %2154 = vmatpush1.msra.mxu0 %v2100
  %2155 = vmatprep.subr.mxu0 0.0
  %2156 = vmatpush1.msra.mxu0 %v2101
  %2157 = vmatprep.subr.mxu0 0.0
  %2158 = vmatpush1.msra.mxu0 %v2102
  %2159 = vmatprep.subr.mxu0 0.0
  %2160 = vmatpush1.msra.mxu0 %v2103
  %2161 = vmatprep.subr.mxu0 0.0
  %2162 = vmatpush1.msra.mxu0 %v2104
  %2163 = vmatprep.subr.mxu0 0.0
  %2164 = vmatpush1.msra.mxu0 %v2105
  %2165 = vmatprep.subr.mxu0 0.0
  %2166 = vmatpush1.msra.mxu0 %v2106
  %2167 = vmatprep.subr.mxu0 0.0
  %2168 = vmatpush1.msra.mxu0 %v2107
  %2169 = vmatprep.subr.mxu0 0.0
  %2170 = vmatpush1.msra.mxu0 %v2108
  %2171 = vmatprep.subr.mxu0 0.0
  %2172 = vmatpush1.msra.mxu0 %v2109
  %2173 = vmatprep.subr.mxu0 0.0
  %2174 = vmatpush1.msra.mxu0 %v2110
  %2175 = vmatprep.subr.mxu0 0.0
  %2176 = vmatpush1.msra.mxu0 %v2111
  %2177 = vmatprep.subr.mxu0 0.0
  %2178 = vmatpush1.msra.mxu0 %v2112
  %2179 = vmatprep.subr.mxu0 0.0
  %2180 = vmatpush1.msra.mxu0 %v2113
  %2181 = vmatprep.subr.mxu0 0.0
  %2182 = vmatpush1.msra.mxu0 %v2114
  %2183 = vmatprep.subr.mxu0 0.0
  %2184 = vmatpush1.msra.mxu0 %v2115
  %2185 = vmatprep.subr.mxu0 0.0
  %2186 = vmatpush1.msra.mxu0 %v2116
  %2187 = vmatprep.subr.mxu0 0.0
  %2188 = vmatpush1.msra.mxu0 %v2117
  %2189 = vmatprep.mubr.f32.mxu0 %v2071
  %2190 = vmatmul.mubr.f32.gmra.mrb[0].mxu0 %v2070
  %v2191 = vpop.f32.mrb[0].mxu0
  %v2192 = vadd.f32 %v2123, %v2191
  %v2193 = vpop.f32.mrb[0].mxu0
  %2194 = vmatprep.mubr.f32.mxu0 %v2073
  %2195 = vmatmul.mubr.f32.gmra.mrb[0].mxu0 %v2072
  %v2196 = vpop.f32.mrb[0].mxu0
  %v2197 = vadd.f32 %v2123, %v2196
  %v2198 = vpop.f32.mrb[0].mxu0
  %2199 = vmatprep.mubr.f32.mxu0 %v2075
  %2200 = vmatmul.mubr.f32.gmra.mrb[0].mxu0 %v2074
  %v2201 = vpop.f32.mrb[0].mxu0
  %v2202 = vadd.f32 %v2123, %v2201
  %v2203 = vpop.f32.mrb[0].mxu0
  %2204 = vmatprep.mubr.f32.mxu0 %v2077
  %2205 = vmatmul.mubr.f32.gmra.mrb[0].mxu0 %v2076
  %v2206 = vpop.f32.mrb[0].mxu0
  %v2207 = vadd.f32 %v2123, %v2206
  %v2208 = vpop.f32.mrb[0].mxu0
  %2209 = vmatprep.mubr.f32.mxu0 %v2079
  %2210 = vmatmul.mubr.f32.gmra.mrb[0].mxu0 %v2078
  %v2211 = vpop.f32.mrb[0].mxu0
  %v2212 = vadd.f32 %v2123, %v2211
  %v2213 = vpop.f32.mrb[0].mxu0
  %2214 = vmatprep.mubr.f32.mxu0 %v2081
  %2215 = vmatmul.mubr.f32.gmra.mrb[0].mxu0 %v2080
  %v2216 = vpop.f32.mrb[0].mxu0
  %v2217 = vadd.f32 %v2123, %v2216
  %v2218 = vpop.f32.mrb[0].mxu0
  %2219 = vmatprep.mubr.f32.mxu0 %v2083
  %2220 = vmatmul.mubr.f32.gmra.mrb[0].mxu0 %v2082
  %v2221 = vpop.f32.mrb[0].mxu0
  %v2222 = vadd.f32 %v2123, %v2221
  %v2223 = vpop.f32.mrb[0].mxu0
  %2224 = vmatprep.mubr.f32.mxu0 %v2085
  %2225 = vmatmul.mubr.f32.gmra.mrb[0].mxu0 %v2084
  %v2226 = vpop.f32.mrb[0].mxu0
  %v2227 = vadd.f32 %v2123, %v2226
  %v2228 = vpop.f32.mrb[0].mxu0
  %2229 = vdwg.mxu0
  %v2230 = vmax.f32 %v2192, 0.0
  %v2231 = vmax.f32 %v2197, 0.0
  %v2232 = vmax.f32 %v2202, 0.0
  %v2233 = vmax.f32 %v2207, 0.0
  %v2234 = vmax.f32 %v2212, 0.0
  %v2235 = vmax.f32 %v2217, 0.0
  %v2236 = vmax.f32 %v2222, 0.0
  %v2237 = vmax.f32 %v2227, 0.0
  %2238 = vst [vmem:[%s18] sm:$0xff] %v2230
  %2239 = vst [vmem:[%s18 + $0x8] sm:$0xff] %v2231
  %2240 = vst [vmem:[%s18 + $0x10] sm:$0xff] %v2232
  %2241 = vst [vmem:[%s18 + $0x18] sm:$0xff] %v2233
  %2242 = vst [vmem:[%s18 + $0x20] sm:$0xff] %v2234
  %2243 = vst [vmem:[%s18 + $0x28] sm:$0xff] %v2235
  %2244 = vst [vmem:[%s18 + $0x30] sm:$0xff] %v2236
  %2245 = vst [vmem:[%s18 + $0x38] sm:$0xff] %v2237
  // Predicated region
  $region74: #{base_model_forward.1} parent=0 // pred_check
    _
  $region75: #{base_model_forward.1} parent=0 // pred_check_branch
    %2247 = sbr.rel (0) target = $region77
  $region76: #{base_model_forward.1} parent=0 // pred_region
    _
  $region77: #{base_model_forward.1} parent=0 // pred_fallthru
    _
  // Predicated region
  $region78: #{base_model_forward.1} parent=0 // pred_check
    _
  $region79: #{base_model_forward.1} parent=0 // pred_check_branch
    %2249 = sbr.rel (0) target = $region81
  $region80: #{base_model_forward.1} parent=0 // pred_region
    _
  $region81: #{base_model_forward.1} parent=0 // pred_fallthru
    _
  // Predicated region
  $region82: #{base_model_forward.1} parent=0 // pred_check
    _
  $region83: #{base_model_forward.1} parent=0 // pred_check_branch
    %2251 = sbr.rel (0) target = $region85
  $region84: #{base_model_forward.1} parent=0 // pred_region
    _
  $region85: #{base_model_forward.1} parent=0 // pred_fallthru
    _
  // Predicated region
  $region86: #{base_model_forward.1} parent=0 // pred_check
    _
  $region87: #{base_model_forward.1} parent=0 // pred_check_branch
    %2253 = sbr.rel (0) target = $region89
  $region88: #{base_model_forward.1} parent=0 // pred_region
    _
  $region89: #{base_model_forward.1} parent=0 // pred_fallthru
    _
  // Predicated region
  $region90: #{base_model_forward.1} parent=0 // pred_check
    _
  $region91: #{base_model_forward.1} parent=0 // pred_check_branch
    %2255 = sbr.rel (0) target = $region93
  $region92: #{base_model_forward.1} parent=0 // pred_region
    _
  $region93: #{base_model_forward.1} parent=0 // pred_fallthru
    _
  // Predicated region
  $region94: #{base_model_forward.1} parent=0 // pred_check
    _
  $region95: #{base_model_forward.1} parent=0 // pred_check_branch
    %2257 = sbr.rel (0) target = $region97
  $region96: #{base_model_forward.1} parent=0 // pred_region
    _
  $region97: #{base_model_forward.1} parent=0 // pred_fallthru
    _

</llo_original>
